<compile_context>
chip_gen: v5e
topology: v5e:2x2
jax: 0.10.0
libtpu: 0.0.40
codegen_flags: <defaults>
</compile_context>

<pallas_src>
import functools

import jax
import jax.numpy as jnp
from jax.experimental import pallas as pl
from jax.experimental.pallas import tpu as pltpu


_SUB = 16  # bf16 sublane packing (rows per native (8,128) f32 tile)


def _round_up(x, m):
    return (x + m - 1) // m * m


def _conv_pads(cin):
    """Tile-aligned per-tap row stride and total K for the stacked-tap conv matmul."""
    cin_pad = _round_up(cin, _SUB)
    k_pad = _round_up(9 * cin_pad + 1, _SUB)
    return cin_pad, k_pad


def _tpu_vmem_bytes():
    try:
        return int(pltpu.get_tpu_info().vmem_capacity_bytes)
    except Exception:
        return 64 * 1024 * 1024  # conservative (v7x-sized) fallback


def _pick_pt(P, cap):
    """Largest divisor of P that is <= cap, preferring multiples of 128."""
    if P <= cap:
        return P
    aligned, best = None, None
    for d in range(cap, 0, -1):
        if P % d == 0:
            if best is None:
                best = d
            if d % 128 == 0:
                aligned = d
                break
    pt = aligned if aligned is not None else best
    if pt is None or pt < 128:
        # No reasonable divisor below the cap: take the smallest divisor >= cap.
        for d in range(cap, P + 1):
            if P % d == 0:
                return d
        return P
    return pt


# ----------------------------------------------------------------------------------
# Pallas kernel
# ----------------------------------------------------------------------------------
def _adaptive_alignment_kernel(x_ref, consts_ref, ow1_ref, ow2_ref,
                               aw1_ref, aw2_ref, vecs_ref,
                               o_ref, taps_ref, samp_ref,
                               *, H, W, PT, C, C1P, K1, C2P, K2):
    P = H * W
    x_bf = x_ref[0]                               # (C, P) bf16

    consts = consts_ref[...]                      # (11, P) f32
    masks = consts[0:9, :]                        # 0/1 border validity per 3x3 tap
    ipf = consts[9:10, :]                         # output row index (f32)
    jpf = consts[10:11, :]                        # output col index (f32)

    vecs = vecs_ref[...]                          # (C//2, 6) f32 per-channel affines

    def conv3x3(xin_f32, cin, cin_pad, k_pad, w_ref):
        """3x3 conv, pad=1, bias folded: one (Cout,k_pad)@(k_pad,P) MXU matmul.

        The 9 shifted + border-masked taps (plus a ones row for the bias) are
        staged bf16 into taps_ref with a tile-aligned row stride of cin_pad.
        """
        k = 0
        for sy in (-1, 0, 1):
            for sx in (-1, 0, 1):
                off = sy * W + sx
                # XLU lane rotation; wrapped lanes are zeroed by the border mask.
                xs = xin_f32 if off == 0 else pltpu.roll(xin_f32, (-off) % P, axis=1)
                base = k * cin_pad
                taps_ref[base:base + cin, :] = (xs * masks[k:k + 1, :]).astype(jnp.bfloat16)
                if cin_pad != cin:                # keep alignment-pad rows finite (zero)
                    taps_ref[base + cin:base + cin_pad, :] = jnp.zeros(
                        (cin_pad - cin, P), jnp.bfloat16)
                k += 1
        taps_ref[9 * cin_pad:9 * cin_pad + 1, :] = jnp.ones((1, P), jnp.bfloat16)
        if k_pad > 9 * cin_pad + 1:
            taps_ref[9 * cin_pad + 1:k_pad, :] = jnp.zeros(
                (k_pad - 9 * cin_pad - 1, P), jnp.bfloat16)
        return jnp.dot(w_ref[...], taps_ref[0:k_pad, :],
                       preferred_element_type=jnp.float32)

    # ------------- offset predictor: Conv3x3+BN+SiLU, BN, ReLU, Conv3x3+BN+SiLU ---
    h1 = jax.nn.silu(conv3x3(x_bf.astype(jnp.float32), C, C1P, K1, ow1_ref))
    h1 = h1 * vecs[:, 0:1] + vecs[:, 1:2]          # standalone BatchNorm2d
    h1 = jnp.maximum(h1, 0.0)                      # ReLU
    off = jax.nn.silu(conv3x3(h1, C // 2, C2P, K2, ow2_ref))
    off_x = off[0:1, :]
    off_y = off[1:2, :]

    # ------------- attention: Conv1x1+BN+SiLU, BN, ReLU, Conv1x1+BN+SiLU, Sigmoid -
    a1 = jnp.dot(aw1_ref[...], x_bf, preferred_element_type=jnp.float32)
    a1 = jax.nn.silu(a1 + vecs[:, 2:3])
    a1 = a1 * vecs[:, 3:4] + vecs[:, 4:5]
    a1 = jnp.maximum(a1, 0.0)
    a2 = jnp.dot(aw2_ref[...], a1.astype(jnp.bfloat16),
                 preferred_element_type=jnp.float32) + vecs[0:1, 5:6]
    att = jax.nn.sigmoid(jax.nn.silu(a2))          # (1, P)

    # ------------- grid_sample coordinates (bilinear, border, align_corners) ------
    # (base_gx + off_x + 1)*0.5*(W-1) simplifies to jp + 0.5*(W-1)*off_x.
    fW = float(W - 1)
    fH = float(H - 1)
    samp_ref[0:1, :] = jnp.clip(jpf + 0.5 * fW * off_x, 0.0, fW)   # ix
    samp_ref[1:2, :] = jnp.clip(ipf + 0.5 * fH * off_y, 0.0, fH)   # iy
    samp_ref[2:3, :] = att

    hh = jax.lax.broadcasted_iota(jnp.int32, (H, 1), 0).astype(jnp.float32)
    ww = jax.lax.broadcasted_iota(jnp.int32, (W, 1), 0).astype(jnp.float32)

    n_blocks = P // PT

    @pl.loop(0, n_blocks)
    def _(blk):
        start = blk * PT
        if PT % 128 == 0:
            start = pl.multiple_of(start, 128)
        sl = pl.ds(start, PT)

        ixb = samp_ref[0:1, sl]                    # (1, PT) f32
        iyb = samp_ref[1:2, sl]
        attb = samp_ref[2:3, sl]
        x0 = jnp.floor(ixb)
        y0 = jnp.floor(iyb)
        wx1 = ixb - x0
        wy1 = iyb - y0
        x1 = jnp.minimum(x0 + 1.0, fW)
        y1 = jnp.minimum(y0 + 1.0, fH)

        # Separable one-hot bilinear weights; equality checks stay exact in f32.
        w_y = jnp.where(hh == y0, 1.0 - wy1, 0.0) + jnp.where(hh == y1, wy1, 0.0)  # (H,PT)
        w_x = jnp.where(ww == x0, 1.0 - wx1, 0.0) + jnp.where(ww == x1, wx1, 0.0)  # (W,PT)
        w_samp = (w_y[:, None, :] * w_x[None, :, :]).reshape(P, PT).astype(jnp.bfloat16)

        aligned = jnp.dot(x_bf, w_samp, preferred_element_type=jnp.float32)  # (C,PT)
        o_ref[0, :, sl] = aligned * attb


# ----------------------------------------------------------------------------------
# Wrapper
# ----------------------------------------------------------------------------------
def adaptive_alignment(feat, kp):
    """feat: (B, C, H, W) float32 (NCHW, like the PyTorch module). Returns NCHW."""
    B, C, H, W = feat.shape
    assert H >= 2 and W >= 2, "AdaptiveAlignment kernel requires H, W >= 2"
    P = H * W
    feat_bf = feat.reshape(B, C, P).astype(jnp.bfloat16)

    # Constant per-pixel data (independent of the batch / grid step):
    # 9 border-validity masks for the 3x3 taps, plus the output row/col indices.
    p = jnp.arange(P, dtype=jnp.int32)
    ip = (p // W).astype(jnp.float32)
    jp = (p % W).astype(jnp.float32)
    rows = []
    for sy in (-1, 0, 1):
        for sx in (-1, 0, 1):
            valid = ((ip + sy >= 0) & (ip + sy <= H - 1) &
                     (jp + sx >= 0) & (jp + sx <= W - 1))
            rows.append(valid.astype(jnp.float32))
    consts = jnp.stack(rows + [ip, jp], axis=0)                    # (11, P) f32

    # Generation-aware column-block width and VMEM limit.
    vmem_cap = _tpu_vmem_bytes()
    if vmem_cap >= 100 * 1024 * 1024:      # v5e / v6e: 128 MiB VMEM
        pt_cap, vmem_limit = 1024, 80 * 1024 * 1024
    else:                                   # v7x: 64 MiB VMEM
        pt_cap, vmem_limit = 512, 40 * 1024 * 1024
    PT = _pick_pt(P, pt_cap)

    c1_pad, k1 = _conv_pads(C)
    c2_pad, k2 = _conv_pads(C // 2)

    kernel = functools.partial(_adaptive_alignment_kernel, H=H, W=W, PT=PT,
                               C=C, C1P=c1_pad, K1=k1, C2P=c2_pad, K2=k2)

    weight_args = [consts, kp['ow1'], kp['ow2'], kp['aw1'], kp['aw2'], kp['vecs']]

    def full_spec(a):
        nd = a.ndim
        return pl.BlockSpec(a.shape, lambda b, _nd=nd: (0,) * _nd)

    out = pl.pallas_call(
        kernel,
        out_shape=jax.ShapeDtypeStruct((B, C, P), jnp.float32),
        grid=(B,),
        in_specs=[pl.BlockSpec((1, C, P), lambda b: (b, 0, 0))] +
                 [full_spec(a) for a in weight_args],
        out_specs=pl.BlockSpec((1, C, P), lambda b: (b, 0, 0)),
        scratch_shapes=[pltpu.VMEM((max(k1, k2), P), jnp.bfloat16),   # stacked taps
                        pltpu.VMEM((8, P), jnp.float32)],             # ix / iy / att
        compiler_params=pltpu.CompilerParams(
            dimension_semantics=("parallel",),
            vmem_limit_bytes=vmem_limit),
    )(feat_bf, *weight_args)
    return out.reshape(B, C, H, W)


# ----------------------------------------------------------------------------------
# Deterministic synthetic parameters (BN folded, eval mode)
# ----------------------------------------------------------------------------------
def init_params(key, channels, eps=1e-5):
    c2 = channels // 2
    keys = jax.random.split(key, 10)

    def conv_w(k, co, ci, kh, kw, scale=0.05):
        return scale * jax.random.normal(k, (co, ci, kh, kw), jnp.float32)

    def bn(k, c):
        k1, k2, k3, k4 = jax.random.split(k, 4)
        return (jax.random.uniform(k1, (c,), jnp.float32, 0.5, 1.5),   # gamma
                0.1 * jax.random.normal(k2, (c,), jnp.float32),        # beta
                0.1 * jax.random.normal(k3, (c,), jnp.float32),        # running mean
                jax.random.uniform(k4, (c,), jnp.float32, 0.5, 1.5))   # running var

    ow1 = conv_w(keys[0], c2, channels, 3, 3); ow1_bn = bn(keys[1], c2)
    obn = bn(keys[2], c2)
    ow2 = conv_w(keys[3], 2, c2, 3, 3);        ow2_bn = bn(keys[4], 2)
    aw1 = conv_w(keys[5], c2, channels, 1, 1); aw1_bn = bn(keys[6], c2)
    abn = bn(keys[7], c2)
    aw2 = conv_w(keys[8], 1, c2, 1, 1);        aw2_bn = bn(keys[9], 1)

    def fold_conv(w, bnp):
        g, b, m, v = bnp
        s = g / jnp.sqrt(v + eps)
        return w * s[:, None, None, None], b - m * s

    def fold_bn(bnp):
        g, b, m, v = bnp
        s = g / jnp.sqrt(v + eps)
        return s, b - m * s

    ow1_f, ob1_f = fold_conv(ow1, ow1_bn)
    os1, osb1 = fold_bn(obn)
    ow2_f, ob2_f = fold_conv(ow2, ow2_bn)
    aw1_f, ab1_f = fold_conv(aw1, aw1_bn)
    as1, asb1 = fold_bn(abn)
    aw2_f, ab2_f = fold_conv(aw2, aw2_bn)

    # Reference (NCHW / OIHW) parameters.
    rp = dict(ow1=ow1_f, ob1=ob1_f, os1=os1, osb1=osb1, ow2=ow2_f, ob2=ob2_f,
              aw1=aw1_f, ab1=ab1_f, as1=as1, asb1=asb1, aw2=aw2_f, ab2=ab2_f)

    # Kernel layout:
    #   3x3 conv weights stacked as (Cout, K_pad) with per-tap row stride padded to
    #   16 (bf16 sublane packing), bias at column 9*cin_pad, zero padding elsewhere
    #   (matches the tile-aligned stacked-tap staging; tap order sy-major/sx-minor);
    #   1x1 attention weights as bf16 (Cout, Cin);
    #   remaining per-channel vectors packed into one (C/2, 6) f32 array.
    def taps_w(w, b):
        co, ci = w.shape[:2]
        ci_pad, k_pad = _conv_pads(ci)
        wt = jnp.transpose(w, (0, 2, 3, 1)).reshape(co, 9, ci)
        out = jnp.zeros((co, k_pad), jnp.float32)
        for k in range(9):
            out = out.at[:, k * ci_pad:k * ci_pad + ci].set(wt[:, k, :])
        out = out.at[:, 9 * ci_pad].set(b)
        return out.astype(jnp.bfloat16)

    ab2_col = jnp.zeros((c2,), jnp.float32).at[0].set(ab2_f[0])
    kp = dict(ow1=taps_w(ow1_f, ob1_f),                       # (C/2, K1_pad) bf16
              ow2=taps_w(ow2_f, ob2_f),                       # (2,   K2_pad) bf16
              aw1=aw1_f[:, :, 0, 0].astype(jnp.bfloat16),     # (C/2, C) bf16
              aw2=aw2_f[:, :, 0, 0].astype(jnp.bfloat16),     # (1, C/2) bf16
              vecs=jnp.stack([os1, osb1, ab1_f, as1, asb1, ab2_col], axis=1))
    return rp, kp


# ----------------------------------------------------------------------------------
# Pure-JAX reference (mirrors the PyTorch forward, eval-mode BN folded)
# ----------------------------------------------------------------------------------
def reference_forward(feat, rp):
    B, C, H, W = feat.shape

    def conv(x, w, b, pad):
        y = jax.lax.conv_general_dilated(
            x, w, (1, 1), [(pad, pad), (pad, pad)],
            dimension_numbers=('NCHW', 'OIHW', 'NCHW'))
        return y + b[None, :, None, None]

    h1 = jax.nn.silu(conv(feat, rp['ow1'], rp['ob1'], 1))
    h1 = h1 * rp['os1'][None, :, None, None] + rp['osb1'][None, :, None, None]
    h1 = jnp.maximum(h1, 0.0)
    offset = jax.nn.silu(conv(h1, rp['ow2'], rp['ob2'], 1))   # (B, 2, H, W)

    gy, gx = jnp.meshgrid(jnp.linspace(-1.0, 1.0, H),
                          jnp.linspace(-1.0, 1.0, W), indexing='ij')
    grid = jnp.stack([gx, gy], axis=0)[None] + offset         # (B, 2, H, W)
    gxs, gys = grid[:, 0], grid[:, 1]
    ix = jnp.clip((gxs + 1.0) * 0.5 * (W - 1), 0.0, W - 1.0)
    iy = jnp.clip((gys + 1.0) * 0.5 * (H - 1), 0.0, H - 1.0)
    x0 = jnp.floor(ix).astype(jnp.int32)
    y0 = jnp.floor(iy).astype(jnp.int32)
    x1 = jnp.minimum(x0 + 1, W - 1)
    y1 = jnp.minimum(y0 + 1, H - 1)
    wx1 = ix - x0
    wx0 = 1.0 - wx1
    wy1 = iy - y0
    wy0 = 1.0 - wy1

    gather = jax.vmap(lambda f, yy, xx: f[:, yy, xx])
    aligned = (gather(feat, y0, x0) * (wy0 * wx0)[:, None] +
               gather(feat, y0, x1) * (wy0 * wx1)[:, None] +
               gather(feat, y1, x0) * (wy1 * wx0)[:, None] +
               gather(feat, y1, x1) * (wy1 * wx1)[:, None])

    a1 = jax.nn.silu(conv(feat, rp['aw1'], rp['ab1'], 0))
    a1 = a1 * rp['as1'][None, :, None, None] + rp['asb1'][None, :, None, None]
    a1 = jnp.maximum(a1, 0.0)
    att = jax.nn.sigmoid(jax.nn.silu(conv(a1, rp['aw2'], rp['ab2'], 0)))
    return aligned * att


# ----------------------------------------------------------------------------------
if __name__ == "__main__":
    key = jax.random.PRNGKey(0)
    kfeat, kparam = jax.random.split(key)

    B, C, H, W = 2, 4, 16, 16
    feat = jax.random.normal(kfeat, (B, C, H, W), jnp.float32)
    rp, kp = init_params(kparam, C)

    out = adaptive_alignment(feat, kp)
    out = jax.block_until_ready(out)
    assert out.shape == (B, C, H, W)

    ref = reference_forward(feat, rp)
    err = float(jnp.max(jnp.abs(out - ref)))
    if err > 5e-2:
        raise AssertionError(f"kernel / reference mismatch: max abs err = {err}")

    print("KERNEL_OK")
</pallas_src>

<mosaic_0001>
module attributes {stable_mosaic.version = 11 : i64} {
  func.func @_adaptive_alignment_kernel(%arg0: i32, %arg1: memref<1x4x256xbf16, #tpu.memory_space<vmem>>, %arg2: memref<11x256xf32, #tpu.memory_space<vmem>>, %arg3: memref<2x160xbf16, #tpu.memory_space<vmem>>, %arg4: memref<2x160xbf16, #tpu.memory_space<vmem>>, %arg5: memref<2x4xbf16, #tpu.memory_space<vmem>>, %arg6: memref<1x2xbf16, #tpu.memory_space<vmem>>, %arg7: memref<2x6xf32, #tpu.memory_space<vmem>>, %arg8: memref<1x4x256xf32, #tpu.memory_space<vmem>>, %arg9: memref<160x256xbf16, #tpu.memory_space<vmem>>, %arg10: memref<8x256xf32, #tpu.memory_space<vmem>>) attributes {dimension_semantics = [#tpu.dimension_semantics<parallel>], iteration_bounds = array<i64: 2>, scalar_prefetch = 0 : i64, scratch_operands = 2 : i64, tpu.core_type = #tpu.core_type<tc>, window_params = [{transform_indices = @transform_0, window_bounds = array<i64: 1, 4, 256>}, {pipeline_mode = #tpu.pipeline_mode<synchronous>, transform_indices = @transform_1, window_bounds = array<i64: 11, 256>}, {pipeline_mode = #tpu.pipeline_mode<synchronous>, transform_indices = @transform_2, window_bounds = array<i64: 2, 160>}, {pipeline_mode = #tpu.pipeline_mode<synchronous>, transform_indices = @transform_3, window_bounds = array<i64: 2, 160>}, {pipeline_mode = #tpu.pipeline_mode<synchronous>, transform_indices = @transform_4, window_bounds = array<i64: 2, 4>}, {pipeline_mode = #tpu.pipeline_mode<synchronous>, transform_indices = @transform_5, window_bounds = array<i64: 1, 2>}, {pipeline_mode = #tpu.pipeline_mode<synchronous>, transform_indices = @transform_6, window_bounds = array<i64: 2, 6>}, {transform_indices = @transform_7, window_bounds = array<i64: 1, 4, 256>}]} {
    %c0 = arith.constant 0 : index
    %c0_0 = arith.constant 0 : index
    %c0_1 = arith.constant 0 : index
    %0 = vector.load %arg1[%c0, %c0_0, %c0_1] : memref<1x4x256xbf16, #tpu.memory_space<vmem>>, vector<1x4x256xbf16>
    %1 = vector.shape_cast %0 : vector<1x4x256xbf16> to vector<4x256xbf16>
    %c0_2 = arith.constant 0 : index
    %c0_3 = arith.constant 0 : index
    %2 = vector.load %arg2[%c0_2, %c0_3] : memref<11x256xf32, #tpu.memory_space<vmem>>, vector<11x256xf32>
    %3 = vector.extract_strided_slice %2 {offsets = [0, 0], sizes = [9, 256], strides = [1, 1]} : vector<11x256xf32> to vector<9x256xf32>
    %4 = vector.extract_strided_slice %2 {offsets = [9, 0], sizes = [1, 256], strides = [1, 1]} : vector<11x256xf32> to vector<1x256xf32>
    %5 = vector.extract_strided_slice %2 {offsets = [10, 0], sizes = [1, 256], strides = [1, 1]} : vector<11x256xf32> to vector<1x256xf32>
    %c0_4 = arith.constant 0 : index
    %c0_5 = arith.constant 0 : index
    %6 = vector.load %arg7[%c0_4, %c0_5] : memref<2x6xf32, #tpu.memory_space<vmem>>, vector<2x6xf32>
    %7 = arith.extf %1 : vector<4x256xbf16> to vector<4x256xf32>
    %c17_i32 = arith.constant 17 : i32
    %8 = tpu.dynamic_rotate %7 by %c17_i32 dim 1 : vector<4x256xf32>, i32 -> vector<4x256xf32>
    %9 = vector.extract_strided_slice %3 {offsets = [0, 0], sizes = [1, 256], strides = [1, 1]} : vector<9x256xf32> to vector<1x256xf32>
    %10 = vector.broadcast %9 : vector<1x256xf32> to vector<4x256xf32>
    %11 = arith.mulf %8, %10 : vector<4x256xf32>
    %12 = arith.truncf %11 : vector<4x256xf32> to vector<4x256xbf16>
    %c0_6 = arith.constant 0 : index
    %c0_7 = arith.constant 0 : index
    %13 = vector.load %arg9[%c0_6, %c0_7] : memref<160x256xbf16, #tpu.memory_space<vmem>>, vector<4x256xbf16>
    tpu.vector_store %arg9[%c0_6, %c0_7], %12 {strides = array<i32>} : memref<160x256xbf16, #tpu.memory_space<vmem>>, vector<4x256xbf16>,
    %cst = arith.constant 0.000000e+00 : bf16
    %14 = vector.broadcast %cst : bf16 to vector<12x256xbf16>
    %c4 = arith.constant 4 : index
    %c0_8 = arith.constant 0 : index
    %15 = vector.load %arg9[%c4, %c0_8] : memref<160x256xbf16, #tpu.memory_space<vmem>>, vector<12x256xbf16>
    tpu.vector_store %arg9[%c4, %c0_8], %14 {strides = array<i32>} : memref<160x256xbf16, #tpu.memory_space<vmem>>, vector<12x256xbf16>,
    %c16_i32 = arith.constant 16 : i32
    %16 = tpu.dynamic_rotate %7 by %c16_i32 dim 1 : vector<4x256xf32>, i32 -> vector<4x256xf32>
    %17 = vector.extract_strided_slice %3 {offsets = [1, 0], sizes = [1, 256], strides = [1, 1]} : vector<9x256xf32> to vector<1x256xf32>
    %18 = vector.broadcast %17 : vector<1x256xf32> to vector<4x256xf32>
    %19 = arith.mulf %16, %18 : vector<4x256xf32>
    %20 = arith.truncf %19 : vector<4x256xf32> to vector<4x256xbf16>
    %c16 = arith.constant 16 : index
    %c0_9 = arith.constant 0 : index
    %21 = vector.load %arg9[%c16, %c0_9] : memref<160x256xbf16, #tpu.memory_space<vmem>>, vector<4x256xbf16>
    tpu.vector_store %arg9[%c16, %c0_9], %20 {strides = array<i32>} : memref<160x256xbf16, #tpu.memory_space<vmem>>, vector<4x256xbf16>,
    %cst_10 = arith.constant 0.000000e+00 : bf16
    %22 = vector.broadcast %cst_10 : bf16 to vector<12x256xbf16>
    %c20 = arith.constant 20 : index
    %c0_11 = arith.constant 0 : index
    %23 = vector.load %arg9[%c20, %c0_11] : memref<160x256xbf16, #tpu.memory_space<vmem>>, vector<12x256xbf16>
    tpu.vector_store %arg9[%c20, %c0_11], %22 {strides = array<i32>} : memref<160x256xbf16, #tpu.memory_space<vmem>>, vector<12x256xbf16>,
    %c15_i32 = arith.constant 15 : i32
    %24 = tpu.dynamic_rotate %7 by %c15_i32 dim 1 : vector<4x256xf32>, i32 -> vector<4x256xf32>
    %25 = vector.extract_strided_slice %3 {offsets = [2, 0], sizes = [1, 256], strides = [1, 1]} : vector<9x256xf32> to vector<1x256xf32>
    %26 = vector.broadcast %25 : vector<1x256xf32> to vector<4x256xf32>
    %27 = arith.mulf %24, %26 : vector<4x256xf32>
    %28 = arith.truncf %27 : vector<4x256xf32> to vector<4x256xbf16>
    %c32 = arith.constant 32 : index
    %c0_12 = arith.constant 0 : index
    %29 = vector.load %arg9[%c32, %c0_12] : memref<160x256xbf16, #tpu.memory_space<vmem>>, vector<4x256xbf16>
    tpu.vector_store %arg9[%c32, %c0_12], %28 {strides = array<i32>} : memref<160x256xbf16, #tpu.memory_space<vmem>>, vector<4x256xbf16>,
    %cst_13 = arith.constant 0.000000e+00 : bf16
    %30 = vector.broadcast %cst_13 : bf16 to vector<12x256xbf16>
    %c36 = arith.constant 36 : index
    %c0_14 = arith.constant 0 : index
    %31 = vector.load %arg9[%c36, %c0_14] : memref<160x256xbf16, #tpu.memory_space<vmem>>, vector<12x256xbf16>
    tpu.vector_store %arg9[%c36, %c0_14], %30 {strides = array<i32>} : memref<160x256xbf16, #tpu.memory_space<vmem>>, vector<12x256xbf16>,
    %c1_i32 = arith.constant 1 : i32
    %32 = tpu.dynamic_rotate %7 by %c1_i32 dim 1 : vector<4x256xf32>, i32 -> vector<4x256xf32>
    %33 = vector.extract_strided_slice %3 {offsets = [3, 0], sizes = [1, 256], strides = [1, 1]} : vector<9x256xf32> to vector<1x256xf32>
    %34 = vector.broadcast %33 : vector<1x256xf32> to vector<4x256xf32>
    %35 = arith.mulf %32, %34 : vector<4x256xf32>
    %36 = arith.truncf %35 : vector<4x256xf32> to vector<4x256xbf16>
    %c48 = arith.constant 48 : index
    %c0_15 = arith.constant 0 : index
    %37 = vector.load %arg9[%c48, %c0_15] : memref<160x256xbf16, #tpu.memory_space<vmem>>, vector<4x256xbf16>
    tpu.vector_store %arg9[%c48, %c0_15], %36 {strides = array<i32>} : memref<160x256xbf16, #tpu.memory_space<vmem>>, vector<4x256xbf16>,
    %cst_16 = arith.constant 0.000000e+00 : bf16
    %38 = vector.broadcast %cst_16 : bf16 to vector<12x256xbf16>
    %c52 = arith.constant 52 : index
    %c0_17 = arith.constant 0 : index
    %39 = vector.load %arg9[%c52, %c0_17] : memref<160x256xbf16, #tpu.memory_space<vmem>>, vector<12x256xbf16>
    tpu.vector_store %arg9[%c52, %c0_17], %38 {strides = array<i32>} : memref<160x256xbf16, #tpu.memory_space<vmem>>, vector<12x256xbf16>,
    %40 = vector.extract_strided_slice %3 {offsets = [4, 0], sizes = [1, 256], strides = [1, 1]} : vector<9x256xf32> to vector<1x256xf32>
    %41 = vector.broadcast %40 : vector<1x256xf32> to vector<4x256xf32>
    %42 = arith.mulf %7, %41 : vector<4x256xf32>
    %43 = arith.truncf %42 : vector<4x256xf32> to vector<4x256xbf16>
    %c64 = arith.constant 64 : index
    %c0_18 = arith.constant 0 : index
    %44 = vector.load %arg9[%c64, %c0_18] : memref<160x256xbf16, #tpu.memory_space<vmem>>, vector<4x256xbf16>
    tpu.vector_store %arg9[%c64, %c0_18], %43 {strides = array<i32>} : memref<160x256xbf16, #tpu.memory_space<vmem>>, vector<4x256xbf16>,
    %cst_19 = arith.constant 0.000000e+00 : bf16
    %45 = vector.broadcast %cst_19 : bf16 to vector<12x256xbf16>
    %c68 = arith.constant 68 : index
    %c0_20 = arith.constant 0 : index
    %46 = vector.load %arg9[%c68, %c0_20] : memref<160x256xbf16, #tpu.memory_space<vmem>>, vector<12x256xbf16>
    tpu.vector_store %arg9[%c68, %c0_20], %45 {strides = array<i32>} : memref<160x256xbf16, #tpu.memory_space<vmem>>, vector<12x256xbf16>,
    %c255_i32 = arith.constant 255 : i32
    %47 = tpu.dynamic_rotate %7 by %c255_i32 dim 1 : vector<4x256xf32>, i32 -> vector<4x256xf32>
    %48 = vector.extract_strided_slice %3 {offsets = [5, 0], sizes = [1, 256], strides = [1, 1]} : vector<9x256xf32> to vector<1x256xf32>
    %49 = vector.broadcast %48 : vector<1x256xf32> to vector<4x256xf32>
    %50 = arith.mulf %47, %49 : vector<4x256xf32>
    %51 = arith.truncf %50 : vector<4x256xf32> to vector<4x256xbf16>
    %c80 = arith.constant 80 : index
    %c0_21 = arith.constant 0 : index
    %52 = vector.load %arg9[%c80, %c0_21] : memref<160x256xbf16, #tpu.memory_space<vmem>>, vector<4x256xbf16>
    tpu.vector_store %arg9[%c80, %c0_21], %51 {strides = array<i32>} : memref<160x256xbf16, #tpu.memory_space<vmem>>, vector<4x256xbf16>,
    %cst_22 = arith.constant 0.000000e+00 : bf16
    %53 = vector.broadcast %cst_22 : bf16 to vector<12x256xbf16>
    %c84 = arith.constant 84 : index
    %c0_23 = arith.constant 0 : index
    %54 = vector.load %arg9[%c84, %c0_23] : memref<160x256xbf16, #tpu.memory_space<vmem>>, vector<12x256xbf16>
    tpu.vector_store %arg9[%c84, %c0_23], %53 {strides = array<i32>} : memref<160x256xbf16, #tpu.memory_space<vmem>>, vector<12x256xbf16>,
    %c241_i32 = arith.constant 241 : i32
    %55 = tpu.dynamic_rotate %7 by %c241_i32 dim 1 : vector<4x256xf32>, i32 -> vector<4x256xf32>
    %56 = vector.extract_strided_slice %3 {offsets = [6, 0], sizes = [1, 256], strides = [1, 1]} : vector<9x256xf32> to vector<1x256xf32>
    %57 = vector.broadcast %56 : vector<1x256xf32> to vector<4x256xf32>
    %58 = arith.mulf %55, %57 : vector<4x256xf32>
    %59 = arith.truncf %58 : vector<4x256xf32> to vector<4x256xbf16>
    %c96 = arith.constant 96 : index
    %c0_24 = arith.constant 0 : index
    %60 = vector.load %arg9[%c96, %c0_24] : memref<160x256xbf16, #tpu.memory_space<vmem>>, vector<4x256xbf16>
    tpu.vector_store %arg9[%c96, %c0_24], %59 {strides = array<i32>} : memref<160x256xbf16, #tpu.memory_space<vmem>>, vector<4x256xbf16>,
    %cst_25 = arith.constant 0.000000e+00 : bf16
    %61 = vector.broadcast %cst_25 : bf16 to vector<12x256xbf16>
    %c100 = arith.constant 100 : index
    %c0_26 = arith.constant 0 : index
    %62 = vector.load %arg9[%c100, %c0_26] : memref<160x256xbf16, #tpu.memory_space<vmem>>, vector<12x256xbf16>
    tpu.vector_store %arg9[%c100, %c0_26], %61 {strides = array<i32>} : memref<160x256xbf16, #tpu.memory_space<vmem>>, vector<12x256xbf16>,
    %c240_i32 = arith.constant 240 : i32
    %63 = tpu.dynamic_rotate %7 by %c240_i32 dim 1 : vector<4x256xf32>, i32 -> vector<4x256xf32>
    %64 = vector.extract_strided_slice %3 {offsets = [7, 0], sizes = [1, 256], strides = [1, 1]} : vector<9x256xf32> to vector<1x256xf32>
    %65 = vector.broadcast %64 : vector<1x256xf32> to vector<4x256xf32>
    %66 = arith.mulf %63, %65 : vector<4x256xf32>
    %67 = arith.truncf %66 : vector<4x256xf32> to vector<4x256xbf16>
    %c112 = arith.constant 112 : index
    %c0_27 = arith.constant 0 : index
    %68 = vector.load %arg9[%c112, %c0_27] : memref<160x256xbf16, #tpu.memory_space<vmem>>, vector<4x256xbf16>
    tpu.vector_store %arg9[%c112, %c0_27], %67 {strides = array<i32>} : memref<160x256xbf16, #tpu.memory_space<vmem>>, vector<4x256xbf16>,
    %cst_28 = arith.constant 0.000000e+00 : bf16
    %69 = vector.broadcast %cst_28 : bf16 to vector<12x256xbf16>
    %c116 = arith.constant 116 : index
    %c0_29 = arith.constant 0 : index
    %70 = vector.load %arg9[%c116, %c0_29] : memref<160x256xbf16, #tpu.memory_space<vmem>>, vector<12x256xbf16>
    tpu.vector_store %arg9[%c116, %c0_29], %69 {strides = array<i32>} : memref<160x256xbf16, #tpu.memory_space<vmem>>, vector<12x256xbf16>,
    %c239_i32 = arith.constant 239 : i32
    %71 = tpu.dynamic_rotate %7 by %c239_i32 dim 1 : vector<4x256xf32>, i32 -> vector<4x256xf32>
    %72 = vector.extract_strided_slice %3 {offsets = [8, 0], sizes = [1, 256], strides = [1, 1]} : vector<9x256xf32> to vector<1x256xf32>
    %73 = vector.broadcast %72 : vector<1x256xf32> to vector<4x256xf32>
    %74 = arith.mulf %71, %73 : vector<4x256xf32>
    %75 = arith.truncf %74 : vector<4x256xf32> to vector<4x256xbf16>
    %c128 = arith.constant 128 : index
    %c0_30 = arith.constant 0 : index
    %76 = vector.load %arg9[%c128, %c0_30] : memref<160x256xbf16, #tpu.memory_space<vmem>>, vector<4x256xbf16>
    tpu.vector_store %arg9[%c128, %c0_30], %75 {strides = array<i32>} : memref<160x256xbf16, #tpu.memory_space<vmem>>, vector<4x256xbf16>,
    %cst_31 = arith.constant 0.000000e+00 : bf16
    %77 = vector.broadcast %cst_31 : bf16 to vector<12x256xbf16>
    %c132 = arith.constant 132 : index
    %c0_32 = arith.constant 0 : index
    %78 = vector.load %arg9[%c132, %c0_32] : memref<160x256xbf16, #tpu.memory_space<vmem>>, vector<12x256xbf16>
    tpu.vector_store %arg9[%c132, %c0_32], %77 {strides = array<i32>} : memref<160x256xbf16, #tpu.memory_space<vmem>>, vector<12x256xbf16>,
    %cst_33 = arith.constant 1.000000e+00 : bf16
    %79 = vector.broadcast %cst_33 : bf16 to vector<1x256xbf16>
    %c144 = arith.constant 144 : index
    %c0_34 = arith.constant 0 : index
    %80 = vector.load %arg9[%c144, %c0_34] : memref<160x256xbf16, #tpu.memory_space<vmem>>, vector<1x256xbf16>
    tpu.vector_store %arg9[%c144, %c0_34], %79 {strides = array<i32>} : memref<160x256xbf16, #tpu.memory_space<vmem>>, vector<1x256xbf16>,
    %cst_35 = arith.constant 0.000000e+00 : bf16
    %81 = vector.broadcast %cst_35 : bf16 to vector<15x256xbf16>
    %c145 = arith.constant 145 : index
    %c0_36 = arith.constant 0 : index
    %82 = vector.load %arg9[%c145, %c0_36] : memref<160x256xbf16, #tpu.memory_space<vmem>>, vector<15x256xbf16>
    tpu.vector_store %arg9[%c145, %c0_36], %81 {strides = array<i32>} : memref<160x256xbf16, #tpu.memory_space<vmem>>, vector<15x256xbf16>,
    %c0_37 = arith.constant 0 : index
    %c0_38 = arith.constant 0 : index
    %83 = vector.load %arg3[%c0_37, %c0_38] : memref<2x160xbf16, #tpu.memory_space<vmem>>, vector<2x160xbf16>
    %c0_39 = arith.constant 0 : index
    %c0_40 = arith.constant 0 : index
    %84 = vector.load %arg9[%c0_39, %c0_40] : memref<160x256xbf16, #tpu.memory_space<vmem>>, vector<160x256xbf16>
    %cst_41 = arith.constant dense<0.000000e+00> : vector<2x256xf32>
    %85 = tpu.matmul %83, %84, %cst_41 {dimension_numbers = #tpu.dot_dimension_numbers<[1], [0], [0], [1], [0, 0, 1, 1], [], []>} : vector<2x160xbf16>, vector<160x256xbf16>, vector<2x256xf32> -> vector<2x256xf32>
    %86 = arith.negf %85 : vector<2x256xf32>
    %87 = math.exp %86 : vector<2x256xf32>
    %cst_42 = arith.constant 1.000000e+00 : f32
    %88 = vector.broadcast %cst_42 : f32 to vector<2x256xf32>
    %89 = arith.addf %88, %87 : vector<2x256xf32>
    %90 = arith.divf %88, %89 : vector<2x256xf32>
    %91 = arith.mulf %85, %90 : vector<2x256xf32>
    %92 = vector.extract_strided_slice %6 {offsets = [0, 0], sizes = [2, 1], strides = [1, 1]} : vector<2x6xf32> to vector<2x1xf32>
    %93 = vector.broadcast %92 : vector<2x1xf32> to vector<2x256xf32>
    %94 = arith.mulf %91, %93 : vector<2x256xf32>
    %95 = vector.extract_strided_slice %6 {offsets = [0, 1], sizes = [2, 1], strides = [1, 1]} : vector<2x6xf32> to vector<2x1xf32>
    %96 = vector.broadcast %95 : vector<2x1xf32> to vector<2x256xf32>
    %97 = arith.addf %94, %96 : vector<2x256xf32>
    %cst_43 = arith.constant 0.000000e+00 : f32
    %98 = vector.broadcast %cst_43 : f32 to vector<2x256xf32>
    %99 = arith.maximumf %97, %98 : vector<2x256xf32>
    %c17_i32_44 = arith.constant 17 : i32
    %100 = tpu.dynamic_rotate %99 by %c17_i32_44 dim 1 : vector<2x256xf32>, i32 -> vector<2x256xf32>
    %101 = vector.extract_strided_slice %3 {offsets = [0, 0], sizes = [1, 256], strides = [1, 1]} : vector<9x256xf32> to vector<1x256xf32>
    %102 = vector.broadcast %101 : vector<1x256xf32> to vector<2x256xf32>
    %103 = arith.mulf %100, %102 : vector<2x256xf32>
    %104 = arith.truncf %103 : vector<2x256xf32> to vector<2x256xbf16>
    %c0_45 = arith.constant 0 : index
    %c0_46 = arith.constant 0 : index
    %105 = vector.load %arg9[%c0_45, %c0_46] : memref<160x256xbf16, #tpu.memory_space<vmem>>, vector<2x256xbf16>
    tpu.vector_store %arg9[%c0_45, %c0_46], %104 {strides = array<i32>} : memref<160x256xbf16, #tpu.memory_space<vmem>>, vector<2x256xbf16>,
    %cst_47 = arith.constant 0.000000e+00 : bf16
    %106 = vector.broadcast %cst_47 : bf16 to vector<14x256xbf16>
    %c2 = arith.constant 2 : index
    %c0_48 = arith.constant 0 : index
    %107 = vector.load %arg9[%c2, %c0_48] : memref<160x256xbf16, #tpu.memory_space<vmem>>, vector<14x256xbf16>
    tpu.vector_store %arg9[%c2, %c0_48], %106 {strides = array<i32>} : memref<160x256xbf16, #tpu.memory_space<vmem>>, vector<14x256xbf16>,
    %c16_i32_49 = arith.constant 16 : i32
    %108 = tpu.dynamic_rotate %99 by %c16_i32_49 dim 1 : vector<2x256xf32>, i32 -> vector<2x256xf32>
    %109 = vector.extract_strided_slice %3 {offsets = [1, 0], sizes = [1, 256], strides = [1, 1]} : vector<9x256xf32> to vector<1x256xf32>
    %110 = vector.broadcast %109 : vector<1x256xf32> to vector<2x256xf32>
    %111 = arith.mulf %108, %110 : vector<2x256xf32>
    %112 = arith.truncf %111 : vector<2x256xf32> to vector<2x256xbf16>
    %c16_50 = arith.constant 16 : index
    %c0_51 = arith.constant 0 : index
    %113 = vector.load %arg9[%c16_50, %c0_51] : memref<160x256xbf16, #tpu.memory_space<vmem>>, vector<2x256xbf16>
    tpu.vector_store %arg9[%c16_50, %c0_51], %112 {strides = array<i32>} : memref<160x256xbf16, #tpu.memory_space<vmem>>, vector<2x256xbf16>,
    %cst_52 = arith.constant 0.000000e+00 : bf16
    %114 = vector.broadcast %cst_52 : bf16 to vector<14x256xbf16>
    %c18 = arith.constant 18 : index
    %c0_53 = arith.constant 0 : index
    %115 = vector.load %arg9[%c18, %c0_53] : memref<160x256xbf16, #tpu.memory_space<vmem>>, vector<14x256xbf16>
    tpu.vector_store %arg9[%c18, %c0_53], %114 {strides = array<i32>} : memref<160x256xbf16, #tpu.memory_space<vmem>>, vector<14x256xbf16>,
    %c15_i32_54 = arith.constant 15 : i32
    %116 = tpu.dynamic_rotate %99 by %c15_i32_54 dim 1 : vector<2x256xf32>, i32 -> vector<2x256xf32>
    %117 = vector.extract_strided_slice %3 {offsets = [2, 0], sizes = [1, 256], strides = [1, 1]} : vector<9x256xf32> to vector<1x256xf32>
    %118 = vector.broadcast %117 : vector<1x256xf32> to vector<2x256xf32>
    %119 = arith.mulf %116, %118 : vector<2x256xf32>
    %120 = arith.truncf %119 : vector<2x256xf32> to vector<2x256xbf16>
    %c32_55 = arith.constant 32 : index
    %c0_56 = arith.constant 0 : index
    %121 = vector.load %arg9[%c32_55, %c0_56] : memref<160x256xbf16, #tpu.memory_space<vmem>>, vector<2x256xbf16>
    tpu.vector_store %arg9[%c32_55, %c0_56], %120 {strides = array<i32>} : memref<160x256xbf16, #tpu.memory_space<vmem>>, vector<2x256xbf16>,
    %cst_57 = arith.constant 0.000000e+00 : bf16
    %122 = vector.broadcast %cst_57 : bf16 to vector<14x256xbf16>
    %c34 = arith.constant 34 : index
    %c0_58 = arith.constant 0 : index
    %123 = vector.load %arg9[%c34, %c0_58] : memref<160x256xbf16, #tpu.memory_space<vmem>>, vector<14x256xbf16>
    tpu.vector_store %arg9[%c34, %c0_58], %122 {strides = array<i32>} : memref<160x256xbf16, #tpu.memory_space<vmem>>, vector<14x256xbf16>,
    %c1_i32_59 = arith.constant 1 : i32
    %124 = tpu.dynamic_rotate %99 by %c1_i32_59 dim 1 : vector<2x256xf32>, i32 -> vector<2x256xf32>
    %125 = vector.extract_strided_slice %3 {offsets = [3, 0], sizes = [1, 256], strides = [1, 1]} : vector<9x256xf32> to vector<1x256xf32>
    %126 = vector.broadcast %125 : vector<1x256xf32> to vector<2x256xf32>
    %127 = arith.mulf %124, %126 : vector<2x256xf32>
    %128 = arith.truncf %127 : vector<2x256xf32> to vector<2x256xbf16>
    %c48_60 = arith.constant 48 : index
    %c0_61 = arith.constant 0 : index
    %129 = vector.load %arg9[%c48_60, %c0_61] : memref<160x256xbf16, #tpu.memory_space<vmem>>, vector<2x256xbf16>
    tpu.vector_store %arg9[%c48_60, %c0_61], %128 {strides = array<i32>} : memref<160x256xbf16, #tpu.memory_space<vmem>>, vector<2x256xbf16>,
    %cst_62 = arith.constant 0.000000e+00 : bf16
    %130 = vector.broadcast %cst_62 : bf16 to vector<14x256xbf16>
    %c50 = arith.constant 50 : index
    %c0_63 = arith.constant 0 : index
    %131 = vector.load %arg9[%c50, %c0_63] : memref<160x256xbf16, #tpu.memory_space<vmem>>, vector<14x256xbf16>
    tpu.vector_store %arg9[%c50, %c0_63], %130 {strides = array<i32>} : memref<160x256xbf16, #tpu.memory_space<vmem>>, vector<14x256xbf16>,
    %132 = vector.extract_strided_slice %3 {offsets = [4, 0], sizes = [1, 256], strides = [1, 1]} : vector<9x256xf32> to vector<1x256xf32>
    %133 = vector.broadcast %132 : vector<1x256xf32> to vector<2x256xf32>
    %134 = arith.mulf %99, %133 : vector<2x256xf32>
    %135 = arith.truncf %134 : vector<2x256xf32> to vector<2x256xbf16>
    %c64_64 = arith.constant 64 : index
    %c0_65 = arith.constant 0 : index
    %136 = vector.load %arg9[%c64_64, %c0_65] : memref<160x256xbf16, #tpu.memory_space<vmem>>, vector<2x256xbf16>
    tpu.vector_store %arg9[%c64_64, %c0_65], %135 {strides = array<i32>} : memref<160x256xbf16, #tpu.memory_space<vmem>>, vector<2x256xbf16>,
    %cst_66 = arith.constant 0.000000e+00 : bf16
    %137 = vector.broadcast %cst_66 : bf16 to vector<14x256xbf16>
    %c66 = arith.constant 66 : index
    %c0_67 = arith.constant 0 : index
    %138 = vector.load %arg9[%c66, %c0_67] : memref<160x256xbf16, #tpu.memory_space<vmem>>, vector<14x256xbf16>
    tpu.vector_store %arg9[%c66, %c0_67], %137 {strides = array<i32>} : memref<160x256xbf16, #tpu.memory_space<vmem>>, vector<14x256xbf16>,
    %c255_i32_68 = arith.constant 255 : i32
    %139 = tpu.dynamic_rotate %99 by %c255_i32_68 dim 1 : vector<2x256xf32>, i32 -> vector<2x256xf32>
    %140 = vector.extract_strided_slice %3 {offsets = [5, 0], sizes = [1, 256], strides = [1, 1]} : vector<9x256xf32> to vector<1x256xf32>
    %141 = vector.broadcast %140 : vector<1x256xf32> to vector<2x256xf32>
    %142 = arith.mulf %139, %141 : vector<2x256xf32>
    %143 = arith.truncf %142 : vector<2x256xf32> to vector<2x256xbf16>
    %c80_69 = arith.constant 80 : index
    %c0_70 = arith.constant 0 : index
    %144 = vector.load %arg9[%c80_69, %c0_70] : memref<160x256xbf16, #tpu.memory_space<vmem>>, vector<2x256xbf16>
    tpu.vector_store %arg9[%c80_69, %c0_70], %143 {strides = array<i32>} : memref<160x256xbf16, #tpu.memory_space<vmem>>, vector<2x256xbf16>,
    %cst_71 = arith.constant 0.000000e+00 : bf16
    %145 = vector.broadcast %cst_71 : bf16 to vector<14x256xbf16>
    %c82 = arith.constant 82 : index
    %c0_72 = arith.constant 0 : index
    %146 = vector.load %arg9[%c82, %c0_72] : memref<160x256xbf16, #tpu.memory_space<vmem>>, vector<14x256xbf16>
    tpu.vector_store %arg9[%c82, %c0_72], %145 {strides = array<i32>} : memref<160x256xbf16, #tpu.memory_space<vmem>>, vector<14x256xbf16>,
    %c241_i32_73 = arith.constant 241 : i32
    %147 = tpu.dynamic_rotate %99 by %c241_i32_73 dim 1 : vector<2x256xf32>, i32 -> vector<2x256xf32>
    %148 = vector.extract_strided_slice %3 {offsets = [6, 0], sizes = [1, 256], strides = [1, 1]} : vector<9x256xf32> to vector<1x256xf32>
    %149 = vector.broadcast %148 : vector<1x256xf32> to vector<2x256xf32>
    %150 = arith.mulf %147, %149 : vector<2x256xf32>
    %151 = arith.truncf %150 : vector<2x256xf32> to vector<2x256xbf16>
    %c96_74 = arith.constant 96 : index
    %c0_75 = arith.constant 0 : index
    %152 = vector.load %arg9[%c96_74, %c0_75] : memref<160x256xbf16, #tpu.memory_space<vmem>>, vector<2x256xbf16>
    tpu.vector_store %arg9[%c96_74, %c0_75], %151 {strides = array<i32>} : memref<160x256xbf16, #tpu.memory_space<vmem>>, vector<2x256xbf16>,
    %cst_76 = arith.constant 0.000000e+00 : bf16
    %153 = vector.broadcast %cst_76 : bf16 to vector<14x256xbf16>
    %c98 = arith.constant 98 : index
    %c0_77 = arith.constant 0 : index
    %154 = vector.load %arg9[%c98, %c0_77] : memref<160x256xbf16, #tpu.memory_space<vmem>>, vector<14x256xbf16>
    tpu.vector_store %arg9[%c98, %c0_77], %153 {strides = array<i32>} : memref<160x256xbf16, #tpu.memory_space<vmem>>, vector<14x256xbf16>,
    %c240_i32_78 = arith.constant 240 : i32
    %155 = tpu.dynamic_rotate %99 by %c240_i32_78 dim 1 : vector<2x256xf32>, i32 -> vector<2x256xf32>
    %156 = vector.extract_strided_slice %3 {offsets = [7, 0], sizes = [1, 256], strides = [1, 1]} : vector<9x256xf32> to vector<1x256xf32>
    %157 = vector.broadcast %156 : vector<1x256xf32> to vector<2x256xf32>
    %158 = arith.mulf %155, %157 : vector<2x256xf32>
    %159 = arith.truncf %158 : vector<2x256xf32> to vector<2x256xbf16>
    %c112_79 = arith.constant 112 : index
    %c0_80 = arith.constant 0 : index
    %160 = vector.load %arg9[%c112_79, %c0_80] : memref<160x256xbf16, #tpu.memory_space<vmem>>, vector<2x256xbf16>
    tpu.vector_store %arg9[%c112_79, %c0_80], %159 {strides = array<i32>} : memref<160x256xbf16, #tpu.memory_space<vmem>>, vector<2x256xbf16>,
    %cst_81 = arith.constant 0.000000e+00 : bf16
    %161 = vector.broadcast %cst_81 : bf16 to vector<14x256xbf16>
    %c114 = arith.constant 114 : index
    %c0_82 = arith.constant 0 : index
    %162 = vector.load %arg9[%c114, %c0_82] : memref<160x256xbf16, #tpu.memory_space<vmem>>, vector<14x256xbf16>
    tpu.vector_store %arg9[%c114, %c0_82], %161 {strides = array<i32>} : memref<160x256xbf16, #tpu.memory_space<vmem>>, vector<14x256xbf16>,
    %c239_i32_83 = arith.constant 239 : i32
    %163 = tpu.dynamic_rotate %99 by %c239_i32_83 dim 1 : vector<2x256xf32>, i32 -> vector<2x256xf32>
    %164 = vector.extract_strided_slice %3 {offsets = [8, 0], sizes = [1, 256], strides = [1, 1]} : vector<9x256xf32> to vector<1x256xf32>
    %165 = vector.broadcast %164 : vector<1x256xf32> to vector<2x256xf32>
    %166 = arith.mulf %163, %165 : vector<2x256xf32>
    %167 = arith.truncf %166 : vector<2x256xf32> to vector<2x256xbf16>
    %c128_84 = arith.constant 128 : index
    %c0_85 = arith.constant 0 : index
    %168 = vector.load %arg9[%c128_84, %c0_85] : memref<160x256xbf16, #tpu.memory_space<vmem>>, vector<2x256xbf16>
    tpu.vector_store %arg9[%c128_84, %c0_85], %167 {strides = array<i32>} : memref<160x256xbf16, #tpu.memory_space<vmem>>, vector<2x256xbf16>,
    %cst_86 = arith.constant 0.000000e+00 : bf16
    %169 = vector.broadcast %cst_86 : bf16 to vector<14x256xbf16>
    %c130 = arith.constant 130 : index
    %c0_87 = arith.constant 0 : index
    %170 = vector.load %arg9[%c130, %c0_87] : memref<160x256xbf16, #tpu.memory_space<vmem>>, vector<14x256xbf16>
    tpu.vector_store %arg9[%c130, %c0_87], %169 {strides = array<i32>} : memref<160x256xbf16, #tpu.memory_space<vmem>>, vector<14x256xbf16>,
    %cst_88 = arith.constant 1.000000e+00 : bf16
    %171 = vector.broadcast %cst_88 : bf16 to vector<1x256xbf16>
    %c144_89 = arith.constant 144 : index
    %c0_90 = arith.constant 0 : index
    %172 = vector.load %arg9[%c144_89, %c0_90] : memref<160x256xbf16, #tpu.memory_space<vmem>>, vector<1x256xbf16>
    tpu.vector_store %arg9[%c144_89, %c0_90], %171 {strides = array<i32>} : memref<160x256xbf16, #tpu.memory_space<vmem>>, vector<1x256xbf16>,
    %cst_91 = arith.constant 0.000000e+00 : bf16
    %173 = vector.broadcast %cst_91 : bf16 to vector<15x256xbf16>
    %c145_92 = arith.constant 145 : index
    %c0_93 = arith.constant 0 : index
    %174 = vector.load %arg9[%c145_92, %c0_93] : memref<160x256xbf16, #tpu.memory_space<vmem>>, vector<15x256xbf16>
    tpu.vector_store %arg9[%c145_92, %c0_93], %173 {strides = array<i32>} : memref<160x256xbf16, #tpu.memory_space<vmem>>, vector<15x256xbf16>,
    %c0_94 = arith.constant 0 : index
    %c0_95 = arith.constant 0 : index
    %175 = vector.load %arg4[%c0_94, %c0_95] : memref<2x160xbf16, #tpu.memory_space<vmem>>, vector<2x160xbf16>
    %c0_96 = arith.constant 0 : index
    %c0_97 = arith.constant 0 : index
    %176 = vector.load %arg9[%c0_96, %c0_97] : memref<160x256xbf16, #tpu.memory_space<vmem>>, vector<160x256xbf16>
    %cst_98 = arith.constant dense<0.000000e+00> : vector<2x256xf32>
    %177 = tpu.matmul %175, %176, %cst_98 {dimension_numbers = #tpu.dot_dimension_numbers<[1], [0], [0], [1], [0, 0, 1, 1], [], []>} : vector<2x160xbf16>, vector<160x256xbf16>, vector<2x256xf32> -> vector<2x256xf32>
    %178 = arith.negf %177 : vector<2x256xf32>
    %179 = math.exp %178 : vector<2x256xf32>
    %cst_99 = arith.constant 1.000000e+00 : f32
    %180 = vector.broadcast %cst_99 : f32 to vector<2x256xf32>
    %181 = arith.addf %180, %179 : vector<2x256xf32>
    %182 = arith.divf %180, %181 : vector<2x256xf32>
    %183 = arith.mulf %177, %182 : vector<2x256xf32>
    %184 = vector.extract_strided_slice %183 {offsets = [0, 0], sizes = [1, 256], strides = [1, 1]} : vector<2x256xf32> to vector<1x256xf32>
    %185 = vector.extract_strided_slice %183 {offsets = [1, 0], sizes = [1, 256], strides = [1, 1]} : vector<2x256xf32> to vector<1x256xf32>
    %c0_100 = arith.constant 0 : index
    %c0_101 = arith.constant 0 : index
    %186 = vector.load %arg5[%c0_100, %c0_101] : memref<2x4xbf16, #tpu.memory_space<vmem>>, vector<2x4xbf16>
    %cst_102 = arith.constant dense<0.000000e+00> : vector<2x256xf32>
    %187 = tpu.matmul %186, %1, %cst_102 {dimension_numbers = #tpu.dot_dimension_numbers<[1], [0], [0], [1], [0, 0, 1, 1], [], []>} : vector<2x4xbf16>, vector<4x256xbf16>, vector<2x256xf32> -> vector<2x256xf32>
    %188 = vector.extract_strided_slice %6 {offsets = [0, 2], sizes = [2, 1], strides = [1, 1]} : vector<2x6xf32> to vector<2x1xf32>
    %189 = vector.broadcast %188 : vector<2x1xf32> to vector<2x256xf32>
    %190 = arith.addf %187, %189 : vector<2x256xf32>
    %191 = arith.negf %190 : vector<2x256xf32>
    %192 = math.exp %191 : vector<2x256xf32>
    %cst_103 = arith.constant 1.000000e+00 : f32
    %193 = vector.broadcast %cst_103 : f32 to vector<2x256xf32>
    %194 = arith.addf %193, %192 : vector<2x256xf32>
    %195 = arith.divf %193, %194 : vector<2x256xf32>
    %196 = arith.mulf %190, %195 : vector<2x256xf32>
    %197 = vector.extract_strided_slice %6 {offsets = [0, 3], sizes = [2, 1], strides = [1, 1]} : vector<2x6xf32> to vector<2x1xf32>
    %198 = vector.broadcast %197 : vector<2x1xf32> to vector<2x256xf32>
    %199 = arith.mulf %196, %198 : vector<2x256xf32>
    %200 = vector.extract_strided_slice %6 {offsets = [0, 4], sizes = [2, 1], strides = [1, 1]} : vector<2x6xf32> to vector<2x1xf32>
    %201 = vector.broadcast %200 : vector<2x1xf32> to vector<2x256xf32>
    %202 = arith.addf %199, %201 : vector<2x256xf32>
    %cst_104 = arith.constant 0.000000e+00 : f32
    %203 = vector.broadcast %cst_104 : f32 to vector<2x256xf32>
    %204 = arith.maximumf %202, %203 : vector<2x256xf32>
    %c0_105 = arith.constant 0 : index
    %c0_106 = arith.constant 0 : index
    %205 = vector.load %arg6[%c0_105, %c0_106] : memref<1x2xbf16, #tpu.memory_space<vmem>>, vector<1x2xbf16>
    %206 = arith.truncf %204 : vector<2x256xf32> to vector<2x256xbf16>
    %cst_107 = arith.constant dense<0.000000e+00> : vector<1x256xf32>
    %207 = tpu.matmul %205, %206, %cst_107 {dimension_numbers = #tpu.dot_dimension_numbers<[1], [0], [0], [1], [0, 0, 1, 1], [], []>} : vector<1x2xbf16>, vector<2x256xbf16>, vector<1x256xf32> -> vector<1x256xf32>
    %208 = vector.extract_strided_slice %6 {offsets = [0, 5], sizes = [1, 1], strides = [1, 1]} : vector<2x6xf32> to vector<1x1xf32>
    %209 = vector.broadcast %208 : vector<1x1xf32> to vector<1x256xf32>
    %210 = arith.addf %207, %209 : vector<1x256xf32>
    %211 = arith.negf %210 : vector<1x256xf32>
    %212 = math.exp %211 : vector<1x256xf32>
    %cst_108 = arith.constant 1.000000e+00 : f32
    %213 = vector.broadcast %cst_108 : f32 to vector<1x256xf32>
    %214 = arith.addf %213, %212 : vector<1x256xf32>
    %215 = arith.divf %213, %214 : vector<1x256xf32>
    %216 = arith.mulf %210, %215 : vector<1x256xf32>
    %217 = arith.negf %216 : vector<1x256xf32>
    %218 = math.exp %217 : vector<1x256xf32>
    %cst_109 = arith.constant 1.000000e+00 : f32
    %219 = vector.broadcast %cst_109 : f32 to vector<1x256xf32>
    %220 = arith.addf %219, %218 : vector<1x256xf32>
    %221 = arith.divf %219, %220 : vector<1x256xf32>
    %cst_110 = arith.constant 7.500000e+00 : f32
    %222 = vector.broadcast %cst_110 : f32 to vector<1x256xf32>
    %223 = arith.mulf %222, %184 : vector<1x256xf32>
    %224 = arith.addf %5, %223 : vector<1x256xf32>
    %cst_111 = arith.constant 0.000000e+00 : f32
    %cst_112 = arith.constant 1.500000e+01 : f32
    %225 = vector.broadcast %cst_111 : f32 to vector<1x256xf32>
    %226 = arith.maximumf %225, %224 : vector<1x256xf32>
    %227 = vector.broadcast %cst_112 : f32 to vector<1x256xf32>
    %228 = arith.minimumf %227, %226 : vector<1x256xf32>
    %c0_113 = arith.constant 0 : index
    %c0_114 = arith.constant 0 : index
    %229 = vector.load %arg10[%c0_113, %c0_114] : memref<8x256xf32, #tpu.memory_space<vmem>>, vector<1x256xf32>
    tpu.vector_store %arg10[%c0_113, %c0_114], %228 {strides = array<i32>} : memref<8x256xf32, #tpu.memory_space<vmem>>, vector<1x256xf32>,
    %cst_115 = arith.constant 7.500000e+00 : f32
    %230 = vector.broadcast %cst_115 : f32 to vector<1x256xf32>
    %231 = arith.mulf %230, %185 : vector<1x256xf32>
    %232 = arith.addf %4, %231 : vector<1x256xf32>
    %cst_116 = arith.constant 0.000000e+00 : f32
    %cst_117 = arith.constant 1.500000e+01 : f32
    %233 = vector.broadcast %cst_116 : f32 to vector<1x256xf32>
    %234 = arith.maximumf %233, %232 : vector<1x256xf32>
    %235 = vector.broadcast %cst_117 : f32 to vector<1x256xf32>
    %236 = arith.minimumf %235, %234 : vector<1x256xf32>
    %c1 = arith.constant 1 : index
    %c0_118 = arith.constant 0 : index
    %237 = vector.load %arg10[%c1, %c0_118] : memref<8x256xf32, #tpu.memory_space<vmem>>, vector<1x256xf32>
    tpu.vector_store %arg10[%c1, %c0_118], %236 {strides = array<i32>} : memref<8x256xf32, #tpu.memory_space<vmem>>, vector<1x256xf32>,
    %c2_119 = arith.constant 2 : index
    %c0_120 = arith.constant 0 : index
    %238 = vector.load %arg10[%c2_119, %c0_120] : memref<8x256xf32, #tpu.memory_space<vmem>>, vector<1x256xf32>
    tpu.vector_store %arg10[%c2_119, %c0_120], %221 {strides = array<i32>} : memref<8x256xf32, #tpu.memory_space<vmem>>, vector<1x256xf32>,
    %239 = tpu.iota {dimensions = array<i32: 0>} : vector<16x1xi32>
    %240 = arith.sitofp %239 : vector<16x1xi32> to vector<16x1xf32>
    %241 = tpu.iota {dimensions = array<i32: 0>} : vector<16x1xi32>
    %242 = arith.sitofp %241 : vector<16x1xi32> to vector<16x1xf32>
    %c0_i32 = arith.constant 0 : i32
    %c1_i32_121 = arith.constant 1 : i32
    %243 = arith.muli %c0_i32, %c1_i32_121 : i32
    %c0_i32_122 = arith.constant 0 : i32
    %244 = arith.addi %c0_i32_122, %243 : i32
    %c256_i32 = arith.constant 256 : i32
    %245 = arith.muli %244, %c256_i32 : i32
    %246 = tpu.assume_multiple %245, 128 : i32
    %c0_123 = arith.constant 0 : index
    %247 = arith.index_cast %246 : i32 to index
    %248 = vector.load %arg10[%c0_123, %247] : memref<8x256xf32, #tpu.memory_space<vmem>>, vector<1x256xf32>
    %c1_124 = arith.constant 1 : index
    %249 = arith.index_cast %246 : i32 to index
    %250 = vector.load %arg10[%c1_124, %249] : memref<8x256xf32, #tpu.memory_space<vmem>>, vector<1x256xf32>
    %c2_125 = arith.constant 2 : index
    %251 = arith.index_cast %246 : i32 to index
    %252 = vector.load %arg10[%c2_125, %251] : memref<8x256xf32, #tpu.memory_space<vmem>>, vector<1x256xf32>
    %253 = math.floor %248 : vector<1x256xf32>
    %254 = math.floor %250 : vector<1x256xf32>
    %255 = arith.subf %248, %253 : vector<1x256xf32>
    %256 = arith.subf %250, %254 : vector<1x256xf32>
    %cst_126 = arith.constant 1.000000e+00 : f32
    %257 = vector.broadcast %cst_126 : f32 to vector<1x256xf32>
    %258 = arith.addf %253, %257 : vector<1x256xf32>
    %cst_127 = arith.constant 1.500000e+01 : f32
    %259 = vector.broadcast %cst_127 : f32 to vector<1x256xf32>
    %260 = arith.minimumf %258, %259 : vector<1x256xf32>
    %cst_128 = arith.constant 1.000000e+00 : f32
    %261 = vector.broadcast %cst_128 : f32 to vector<1x256xf32>
    %262 = arith.addf %254, %261 : vector<1x256xf32>
    %cst_129 = arith.constant 1.500000e+01 : f32
    %263 = vector.broadcast %cst_129 : f32 to vector<1x256xf32>
    %264 = arith.minimumf %262, %263 : vector<1x256xf32>
    %265 = vector.broadcast %240 : vector<16x1xf32> to vector<16x256xf32>
    %266 = vector.broadcast %254 : vector<1x256xf32> to vector<16x256xf32>
    %267 = arith.cmpf oeq, %265, %266 : vector<16x256xf32>
    %cst_130 = arith.constant 1.000000e+00 : f32
    %268 = vector.broadcast %cst_130 : f32 to vector<1x256xf32>
    %269 = arith.subf %268, %256 : vector<1x256xf32>
    %cst_131 = arith.constant 0.000000e+00 : f32
    %270 = vector.shape_cast %269 : vector<1x256xf32> to vector<1x256xf32>
    %271 = vector.broadcast %270 : vector<1x256xf32> to vector<16x256xf32>
    %272 = vector.broadcast %cst_131 : f32 to vector<16x256xf32>
    %273 = arith.select %267, %271, %272 : vector<16x256xi1>, vector<16x256xf32>
    %274 = vector.broadcast %240 : vector<16x1xf32> to vector<16x256xf32>
    %275 = vector.broadcast %264 : vector<1x256xf32> to vector<16x256xf32>
    %276 = arith.cmpf oeq, %274, %275 : vector<16x256xf32>
    %cst_132 = arith.constant 0.000000e+00 : f32
    %277 = vector.shape_cast %256 : vector<1x256xf32> to vector<1x256xf32>
    %278 = vector.broadcast %277 : vector<1x256xf32> to vector<16x256xf32>
    %279 = vector.broadcast %cst_132 : f32 to vector<16x256xf32>
    %280 = arith.select %276, %278, %279 : vector<16x256xi1>, vector<16x256xf32>
    %281 = arith.addf %273, %280 : vector<16x256xf32>
    %282 = vector.broadcast %242 : vector<16x1xf32> to vector<16x256xf32>
    %283 = vector.broadcast %253 : vector<1x256xf32> to vector<16x256xf32>
    %284 = arith.cmpf oeq, %282, %283 : vector<16x256xf32>
    %cst_133 = arith.constant 1.000000e+00 : f32
    %285 = vector.broadcast %cst_133 : f32 to vector<1x256xf32>
    %286 = arith.subf %285, %255 : vector<1x256xf32>
    %cst_134 = arith.constant 0.000000e+00 : f32
    %287 = vector.shape_cast %286 : vector<1x256xf32> to vector<1x256xf32>
    %288 = vector.broadcast %287 : vector<1x256xf32> to vector<16x256xf32>
    %289 = vector.broadcast %cst_134 : f32 to vector<16x256xf32>
    %290 = arith.select %284, %288, %289 : vector<16x256xi1>, vector<16x256xf32>
    %291 = vector.broadcast %242 : vector<16x1xf32> to vector<16x256xf32>
    %292 = vector.broadcast %260 : vector<1x256xf32> to vector<16x256xf32>
    %293 = arith.cmpf oeq, %291, %292 : vector<16x256xf32>
    %cst_135 = arith.constant 0.000000e+00 : f32
    %294 = vector.shape_cast %255 : vector<1x256xf32> to vector<1x256xf32>
    %295 = vector.broadcast %294 : vector<1x256xf32> to vector<16x256xf32>
    %296 = vector.broadcast %cst_135 : f32 to vector<16x256xf32>
    %297 = arith.select %293, %295, %296 : vector<16x256xi1>, vector<16x256xf32>
    %298 = arith.addf %290, %297 : vector<16x256xf32>
    %299 = vector.shape_cast %281 : vector<16x256xf32> to vector<16x1x256xf32>
    %300 = vector.shape_cast %298 : vector<16x256xf32> to vector<1x16x256xf32>
    %301 = vector.broadcast %299 : vector<16x1x256xf32> to vector<16x16x256xf32>
    %302 = vector.broadcast %300 : vector<1x16x256xf32> to vector<16x16x256xf32>
    %303 = arith.mulf %301, %302 : vector<16x16x256xf32>
    %304 = vector.shape_cast %303 : vector<16x16x256xf32> to vector<256x256xf32>
    %305 = arith.truncf %304 : vector<256x256xf32> to vector<256x256xbf16>
    %cst_136 = arith.constant dense<0.000000e+00> : vector<4x256xf32>
    %306 = tpu.matmul %1, %305, %cst_136 {dimension_numbers = #tpu.dot_dimension_numbers<[1], [0], [0], [1], [0, 0, 1, 1], [], []>} : vector<4x256xbf16>, vector<256x256xbf16>, vector<4x256xf32> -> vector<4x256xf32>
    %307 = vector.broadcast %252 : vector<1x256xf32> to vector<4x256xf32>
    %308 = arith.mulf %306, %307 : vector<4x256xf32>
    %c0_137 = arith.constant 0 : index
    %c0_138 = arith.constant 0 : index
    %309 = arith.index_cast %246 : i32 to index
    %310 = vector.load %arg8[%c0_137, %c0_138, %309] : memref<1x4x256xf32, #tpu.memory_space<vmem>>, vector<1x4x256xf32>
    %311 = vector.shape_cast %310 : vector<1x4x256xf32> to vector<4x256xf32>
    %312 = vector.shape_cast %308 : vector<4x256xf32> to vector<1x4x256xf32>
    tpu.vector_store %arg8[%c0_137, %c0_138, %309], %312 {strides = array<i32>} : memref<1x4x256xf32, #tpu.memory_space<vmem>>, vector<1x4x256xf32>,
    %c1_i32_139 = arith.constant 1 : i32
    return
  }
  func.func @transform_0(%arg0: i32) -> (i32, i32, i32) {
    %c0_i32 = arith.constant 0 : i32
    %c0_i32_0 = arith.constant 0 : i32
    %c0_i32_1 = arith.constant 0 : i32
    return %arg0, %c0_i32, %c0_i32_0 : i32, i32, i32
  }
  func.func @transform_1(%arg0: i32) -> (i32, i32) {
    %c0_i32 = arith.constant 0 : i32
    %c0_i32_0 = arith.constant 0 : i32
    %c0_i32_1 = arith.constant 0 : i32
    return %c0_i32, %c0_i32_0 : i32, i32
  }
  func.func @transform_2(%arg0: i32) -> (i32, i32) {
    %c0_i32 = arith.constant 0 : i32
    %c0_i32_0 = arith.constant 0 : i32
    %c0_i32_1 = arith.constant 0 : i32
    return %c0_i32, %c0_i32_0 : i32, i32
  }
  func.func @transform_3(%arg0: i32) -> (i32, i32) {
    %c0_i32 = arith.constant 0 : i32
    %c0_i32_0 = arith.constant 0 : i32
    %c0_i32_1 = arith.constant 0 : i32
    return %c0_i32, %c0_i32_0 : i32, i32
  }
  func.func @transform_4(%arg0: i32) -> (i32, i32) {
    %c0_i32 = arith.constant 0 : i32
    %c0_i32_0 = arith.constant 0 : i32
    %c0_i32_1 = arith.constant 0 : i32
    return %c0_i32, %c0_i32_0 : i32, i32
  }
  func.func @transform_5(%arg0: i32) -> (i32, i32) {
    %c0_i32 = arith.constant 0 : i32
    %c0_i32_0 = arith.constant 0 : i32
    %c0_i32_1 = arith.constant 0 : i32
    return %c0_i32, %c0_i32_0 : i32, i32
  }
  func.func @transform_6(%arg0: i32) -> (i32, i32) {
    %c0_i32 = arith.constant 0 : i32
    %c0_i32_0 = arith.constant 0 : i32
    %c0_i32_1 = arith.constant 0 : i32
    return %c0_i32, %c0_i32_0 : i32, i32
  }
  func.func @transform_7(%arg0: i32) -> (i32, i32, i32) {
    %c0_i32 = arith.constant 0 : i32
    %c0_i32_0 = arith.constant 0 : i32
    %c0_i32_1 = arith.constant 0 : i32
    return %arg0, %c0_i32, %c0_i32_0 : i32, i32, i32
  }
}

</mosaic_0001>

<llo_original>
// kernel: tpu_custom_call.1
$region0: #{tpu_custom_call.1}
  #allocation0 [shape = 'u32[]', space=smem, size = 0x4, offset = 0x4, fixed_abs, tag = 'smem constant byte address 0x4 - core index']
  #allocation1 [shape = 'u32[72,128]{1,0:T(1,128)}', space=vmem, size = 0x9000, scoped, tag = 'internal scratch']
  #allocation2 [shape = 'bf16[160,256]{1,0:T(8,128)(2,1)}', space=vmem, size = 0x14000, scoped, tag = 'scratch operand']
  #allocation3 [shape = 'f32[8,256]{1,0:T(8,128)}', space=vmem, size = 0x2000, scoped, tag = 'scratch operand']
  %s0 = inlined_call_operand.hbm [shape: bf16[2,4,256], index: 0, kind: input, shape index: {}]
  %s1 = inlined_call_operand.hbm [shape: f32[11,256], index: 1, kind: input, shape index: {}]
  %s2 = inlined_call_operand.hbm [shape: bf16[2,160], index: 2, kind: input, shape index: {}]
  %s3 = inlined_call_operand.vmem [shape: bf16[2,160], index: 3, kind: input, shape index: {}]
  %s4 = inlined_call_operand.hbm [shape: bf16[2,4], index: 4, kind: input, shape index: {}]
  %s5 = inlined_call_operand.hbm [shape: bf16[1,2], index: 5, kind: input, shape index: {}]
  %s6 = inlined_call_operand.vmem [shape: f32[2,6], index: 6, kind: input, shape index: {}]
  %s7 = inlined_call_operand.hbm [shape: f32[2,4,256], index: 7, kind: output, shape index: {}]
  %s8 = sld [smem:[#allocation0]]
  $region81: #{tpu_custom_call.1} parent=0
    _
  %s10 = ssub.s32 1, %s8
  %s11 = scalar_select 0, %s10, %s8
  $region1: #{tpu_custom_call.1} parent=0
    #allocation4 [shape = 'u8[4096]{0}', space=vmem, size = 0x1000, scoped, tag = 'input window, operand 0']
    #allocation5 [shape = 's32[2]{0}', space=sflag, size = 0x8, scoped, tag = 'scoped memory for tpu_custom_call.1']
    #allocation6 [shape = 's32[2]{0}', space=sflag, size = 0x8, scoped, tag = 'scoped memory for tpu_custom_call.1']
    #allocation7 [shape = 'u8[16384]{0}', space=vmem, size = 0x4000, scoped, tag = 'input window, operand 1, single buffered']
    #allocation8 [shape = 's32[1]{0}', space=sflag, size = 0x4, scoped, tag = 'scoped memory for tpu_custom_call.1']
    #allocation9 [shape = 'u8[1024]{0}', space=vmem, size = 0x400, scoped, tag = 'input window, operand 2, single buffered']
    #allocation10 [shape = 'u8[512]{0}', space=vmem, size = 0x400, scoped, tag = 'input window, operand 4, single buffered']
    #allocation11 [shape = 's32[1]{0}', space=sflag, size = 0x4, scoped, tag = 'scoped memory for tpu_custom_call.1']
    #allocation12 [shape = 'u8[512]{0}', space=vmem, size = 0x400, scoped, tag = 'input window, operand 5, single buffered']
    #allocation13 [shape = 'u8[8192]{0}', space=vmem, size = 0x2000, scoped, tag = 'output window, operand 0']
    %12 = vsyncpa [#allocation5], 0
    %s13 = scalar_lea.sflag [#allocation5], 1
    %14 = vsyncpa %s13, 0
    %15 = vsyncpa [#allocation8], 0
    %16 = vsyncpa [#allocation11], 0
    %17 = vsyncpa [#allocation6], 0
    %s18 = scalar_lea.sflag [#allocation6], 1
    %19 = vsyncpa %s18, 0
    loop: start=0, step=1, limit=4
    $region2: #{tpu_custom_call.1} parent=1 // loop_pre_header
      _
    $region3: #{tpu_custom_call.1} parent=1 // loop_header
      %s21 = sphi 0, %s25
      %p22 = scmp.ge.s32.totalorder %s21, 4
      %s31 = sphi 0, %s33
      %s34 = sphi 0, %s31
      %s35 = sphi 0, %s34
      %s51 = sphi 0, %s35
      %s55 = sphi 0, %s55
      %s57 = sphi 0, %s55
      %s58 = sphi 0, %s57
      %s72 = sphi 0, %s58
      %s76 = sphi 0, %s76
      %s78 = sphi 0, %s76
      %s79 = sphi 0, %s78
      %s93 = sphi 0, %s79
      %s97 = sphi 0, %s97
      %s99 = sphi 0, %s97
      %s100 = sphi 0, %s99
      %s114 = sphi 0, %s100
      %s118 = sphi 0, %s118
      %s120 = sphi 0, %s118
      %s121 = sphi 0, %s120
      %s135 = sphi 0, %s121
      %s139 = sphi 0, %s139
      %s141 = sphi 0, %s139
      %s142 = sphi 0, %s141
      %s156 = sphi 0, %s142
      %s160 = sphi 0, %s160
      %s162 = sphi 0, %s160
      %s163 = sphi 0, %s162
      %s177 = sphi 0, %s163
      %s183 = sphi 0, %s185
      %s186 = sphi 0, %s183
      %s187 = sphi 0, %s186
      %s203 = sphi 0, %s187
    $region4: #{tpu_custom_call.1} parent=1 // loop_header_branch
      %24 = sbr.rel (%p22) target = $region8
    $region5: #{tpu_custom_call.1} parent=1 // loop_body
      %s26 = ssub.s32 %s21, 1
      %s27 = ssub.s32 %s21, 2
      %s28 = sadd.s32 %s21, 1
      %s29 = ssub.s32 %s21, %s28
      %p30 = scmp.eq.s32.totalorder %s29, 0
      %s32 = sadd.s32 %s31, 1
      %s33 = scalar_select %p30, %s31, %s32
      %p36 = pneg %p30
      %p37 = scmp.eq.s32.totalorder %s21, 1
      %p38 = por %p36, %p37
      %p39 = scmp.ne.s32.totalorder %s31, %s34
      %p40 = scmp.eq.s32.totalorder %s21, 0
      %p41 = por %p39, %p40
      %p42 = scmp.ne.s32.totalorder %s31, %s34
      %p43 = scmp.eq.s32.totalorder %s26, 1
      %p44 = por %p42, %p43
      %p45 = scmp.ne.s32.totalorder %s34, %s35
      %p46 = scmp.eq.s32.totalorder %s26, 0
      %p47 = por %p45, %p46
      %p48 = scmp.ne.s32.totalorder %s34, %s35
      %p49 = scmp.eq.s32.totalorder %s27, 1
      %p50 = por %p48, %p49
      %p52 = scmp.ne.s32.totalorder %s35, %s51
      %p53 = scmp.eq.s32.totalorder %s27, 0
      %p54 = por %p52, %p53
      %s56 = sadd.s32 %s55, 1
      %p59 = scmp.eq.s32.totalorder %s21, 1
      %p60 = scmp.ne.s32.totalorder %s55, %s57
      %p61 = scmp.eq.s32.totalorder %s21, 0
      %p62 = por %p60, %p61
      %p63 = scmp.ne.s32.totalorder %s55, %s57
      %p64 = scmp.eq.s32.totalorder %s26, 1
      %p65 = por %p63, %p64
      %p66 = scmp.ne.s32.totalorder %s57, %s58
      %p67 = scmp.eq.s32.totalorder %s26, 0
      %p68 = por %p66, %p67
      %p69 = scmp.ne.s32.totalorder %s57, %s58
      %p70 = scmp.eq.s32.totalorder %s27, 1
      %p71 = por %p69, %p70
      %p73 = scmp.ne.s32.totalorder %s58, %s72
      %p74 = scmp.eq.s32.totalorder %s27, 0
      %p75 = por %p73, %p74
      %s77 = sadd.s32 %s76, 1
      %p80 = scmp.eq.s32.totalorder %s21, 1
      %p81 = scmp.ne.s32.totalorder %s76, %s78
      %p82 = scmp.eq.s32.totalorder %s21, 0
      %p83 = por %p81, %p82
      %p84 = scmp.ne.s32.totalorder %s76, %s78
      %p85 = scmp.eq.s32.totalorder %s26, 1
      %p86 = por %p84, %p85
      %p87 = scmp.ne.s32.totalorder %s78, %s79
      %p88 = scmp.eq.s32.totalorder %s26, 0
      %p89 = por %p87, %p88
      %p90 = scmp.ne.s32.totalorder %s78, %s79
      %p91 = scmp.eq.s32.totalorder %s27, 1
      %p92 = por %p90, %p91
      %p94 = scmp.ne.s32.totalorder %s79, %s93
      %p95 = scmp.eq.s32.totalorder %s27, 0
      %p96 = por %p94, %p95
      %s98 = sadd.s32 %s97, 1
      %p101 = scmp.eq.s32.totalorder %s21, 1
      %p102 = scmp.ne.s32.totalorder %s97, %s99
      %p103 = scmp.eq.s32.totalorder %s21, 0
      %p104 = por %p102, %p103
      %p105 = scmp.ne.s32.totalorder %s97, %s99
      %p106 = scmp.eq.s32.totalorder %s26, 1
      %p107 = por %p105, %p106
      %p108 = scmp.ne.s32.totalorder %s99, %s100
      %p109 = scmp.eq.s32.totalorder %s26, 0
      %p110 = por %p108, %p109
      %p111 = scmp.ne.s32.totalorder %s99, %s100
      %p112 = scmp.eq.s32.totalorder %s27, 1
      %p113 = por %p111, %p112
      %p115 = scmp.ne.s32.totalorder %s100, %s114
      %p116 = scmp.eq.s32.totalorder %s27, 0
      %p117 = por %p115, %p116
      %s119 = sadd.s32 %s118, 1
      %p122 = scmp.eq.s32.totalorder %s21, 1
      %p123 = scmp.ne.s32.totalorder %s118, %s120
      %p124 = scmp.eq.s32.totalorder %s21, 0
      %p125 = por %p123, %p124
      %p126 = scmp.ne.s32.totalorder %s118, %s120
      %p127 = scmp.eq.s32.totalorder %s26, 1
      %p128 = por %p126, %p127
      %p129 = scmp.ne.s32.totalorder %s120, %s121
      %p130 = scmp.eq.s32.totalorder %s26, 0
      %p131 = por %p129, %p130
      %p132 = scmp.ne.s32.totalorder %s120, %s121
      %p133 = scmp.eq.s32.totalorder %s27, 1
      %p134 = por %p132, %p133
      %p136 = scmp.ne.s32.totalorder %s121, %s135
      %p137 = scmp.eq.s32.totalorder %s27, 0
      %p138 = por %p136, %p137
      %s140 = sadd.s32 %s139, 1
      %p143 = scmp.eq.s32.totalorder %s21, 1
      %p144 = scmp.ne.s32.totalorder %s139, %s141
      %p145 = scmp.eq.s32.totalorder %s21, 0
      %p146 = por %p144, %p145
      %p147 = scmp.ne.s32.totalorder %s139, %s141
      %p148 = scmp.eq.s32.totalorder %s26, 1
      %p149 = por %p147, %p148
      %p150 = scmp.ne.s32.totalorder %s141, %s142
      %p151 = scmp.eq.s32.totalorder %s26, 0
      %p152 = por %p150, %p151
      %p153 = scmp.ne.s32.totalorder %s141, %s142
      %p154 = scmp.eq.s32.totalorder %s27, 1
      %p155 = por %p153, %p154
      %p157 = scmp.ne.s32.totalorder %s142, %s156
      %p158 = scmp.eq.s32.totalorder %s27, 0
      %p159 = por %p157, %p158
      %s161 = sadd.s32 %s160, 1
      %p164 = scmp.eq.s32.totalorder %s21, 1
      %p165 = scmp.ne.s32.totalorder %s160, %s162
      %p166 = scmp.eq.s32.totalorder %s21, 0
      %p167 = por %p165, %p166
      %p168 = scmp.ne.s32.totalorder %s160, %s162
      %p169 = scmp.eq.s32.totalorder %s26, 1
      %p170 = por %p168, %p169
      %p171 = scmp.ne.s32.totalorder %s162, %s163
      %p172 = scmp.eq.s32.totalorder %s26, 0
      %p173 = por %p171, %p172
      %p174 = scmp.ne.s32.totalorder %s162, %s163
      %p175 = scmp.eq.s32.totalorder %s27, 1
      %p176 = por %p174, %p175
      %p178 = scmp.ne.s32.totalorder %s163, %s177
      %p179 = scmp.eq.s32.totalorder %s27, 0
      %p180 = por %p178, %p179
      %s181 = ssub.s32 %s21, %s28
      %p182 = scmp.eq.s32.totalorder %s181, 0
      %s184 = sadd.s32 %s183, 1
      %s185 = scalar_select %p182, %s183, %s184
      %p188 = pneg %p182
      %p189 = scmp.eq.s32.totalorder %s21, 1
      %p190 = por %p188, %p189
      %p191 = scmp.ne.s32.totalorder %s183, %s186
      %p192 = scmp.eq.s32.totalorder %s21, 0
      %p193 = por %p191, %p192
      %p194 = scmp.ne.s32.totalorder %s183, %s186
      %p195 = scmp.eq.s32.totalorder %s26, 1
      %p196 = por %p194, %p195
      %p197 = scmp.ne.s32.totalorder %s186, %s187
      %p198 = scmp.eq.s32.totalorder %s26, 0
      %p199 = por %p197, %p198
      %p200 = scmp.ne.s32.totalorder %s186, %s187
      %p201 = scmp.eq.s32.totalorder %s27, 1
      %p202 = por %p200, %p201
      %p204 = scmp.ne.s32.totalorder %s187, %s203
      %p205 = scmp.eq.s32.totalorder %s27, 0
      %p206 = por %p204, %p205
      %p207 = scmp.le.s32.totalorder 1, %s21
      %p208 = scmp.lt.s32.totalorder %s21, 3
      %p209 = pnand %p207, %p208
      %p210 = pneg %p209
      // Predicated region
      $region9: #{tpu_custom_call.1} parent=5 // pred_check
        _
      $region10: #{tpu_custom_call.1} parent=5 // pred_check_branch
        %212 = sbr.rel (%p209) target = $region12
      $region11: #{tpu_custom_call.1} parent=5 // pred_region
        %s213 = ssub.s32 %s21, 1
        // Predicated region
        $region13: #{tpu_custom_call.1} parent=11 // pred_check
          %p214 = pneg %p68
        $region14: #{tpu_custom_call.1} parent=11 // pred_check_branch
          %216 = sbr.rel (%p214) target = $region16
        $region15: #{tpu_custom_call.1} parent=11 // pred_region
          %218 = vsyncadd [#allocation8], 0
          %s219 = sshll.u32 %s1, 4
          %s220 = int_to_ptr.hbm [resolvable:$true] %s219
          %s221 = sshll.u32 [#allocation7], 4
          %s222 = int_to_ptr.vmem [resolvable:$true] %s221
          %227 = dma.hbm_to_vmem [thread:$0]  %s220, 512, %s222, [#allocation8], 256, 256, 16
        $region16: #{tpu_custom_call.1} parent=11 // pred_fallthru
          _
        // Predicated region
        $region17: #{tpu_custom_call.1} parent=11 // pred_check
          %p228 = pneg %p89
        $region18: #{tpu_custom_call.1} parent=11 // pred_check_branch
          %230 = sbr.rel (%p228) target = $region20
        $region19: #{tpu_custom_call.1} parent=11 // pred_region
          %232 = vsyncadd [#allocation8], 0
          %s234 = sshll.u32 %s2, 4
          %s235 = int_to_ptr.hbm [resolvable:$true] %s234
          %s236 = sshll.u32 [#allocation9], 4
          %s237 = int_to_ptr.vmem [resolvable:$true] %s236
          %239 = dma.hbm_to_vmem [thread:$0]  %s235, 32, %s237, [#allocation8]
        $region20: #{tpu_custom_call.1} parent=11 // pred_fallthru
          _
        // Predicated region
        $region21: #{tpu_custom_call.1} parent=11 // pred_check
          %p240 = pneg %p110
        $region22: #{tpu_custom_call.1} parent=11 // pred_check_branch
          %242 = sbr.rel (%p240) target = $region24
        $region23: #{tpu_custom_call.1} parent=11 // pred_region
          _
        $region24: #{tpu_custom_call.1} parent=11 // pred_fallthru
          _
        // Predicated region
        $region25: #{tpu_custom_call.1} parent=11 // pred_check
          %p243 = pneg %p131
        $region26: #{tpu_custom_call.1} parent=11 // pred_check_branch
          %245 = sbr.rel (%p243) target = $region28
        $region27: #{tpu_custom_call.1} parent=11 // pred_region
          %247 = vsyncadd [#allocation11], 0
          %s249 = sshll.u32 %s4, 4
          %s250 = int_to_ptr.hbm [resolvable:$true] %s249
          %s251 = sshll.u32 [#allocation10], 4
          %s252 = int_to_ptr.vmem [resolvable:$true] %s251
          %254 = dma.hbm_to_vmem [thread:$0]  %s250, 16, %s252, [#allocation11]
        $region28: #{tpu_custom_call.1} parent=11 // pred_fallthru
          _
        // Predicated region
        $region29: #{tpu_custom_call.1} parent=11 // pred_check
          %p255 = pneg %p152
        $region30: #{tpu_custom_call.1} parent=11 // pred_check_branch
          %257 = sbr.rel (%p255) target = $region32
        $region31: #{tpu_custom_call.1} parent=11 // pred_region
          %259 = vsyncadd [#allocation11], 0
          %s261 = sshll.u32 %s5, 4
          %s262 = int_to_ptr.hbm [resolvable:$true] %s261
          %s263 = sshll.u32 [#allocation12], 4
          %s264 = int_to_ptr.vmem [resolvable:$true] %s263
          %266 = dma.hbm_to_vmem [thread:$0]  %s262, 16, %s264, [#allocation11]
        $region32: #{tpu_custom_call.1} parent=11 // pred_fallthru
          _
        // Predicated region
        $region33: #{tpu_custom_call.1} parent=11 // pred_check
          %p267 = pneg %p173
        $region34: #{tpu_custom_call.1} parent=11 // pred_check_branch
          %269 = sbr.rel (%p267) target = $region36
        $region35: #{tpu_custom_call.1} parent=11 // pred_region
          _
        $region36: #{tpu_custom_call.1} parent=11 // pred_fallthru
          _
      $region12: #{tpu_custom_call.1} parent=5 // pred_fallthru
        _
      %p270 = scmp.lt.s32.totalorder %s21, 2
      // Predicated region
      $region37: #{tpu_custom_call.1} parent=5 // pred_check
        %p271 = pneg %p270
      $region38: #{tpu_custom_call.1} parent=5 // pred_check_branch
        %273 = sbr.rel (%p271) target = $region40
      $region39: #{tpu_custom_call.1} parent=5 // pred_region
        // Predicated region
        $region41: #{tpu_custom_call.1} parent=39 // pred_check
          %p274 = pneg %p41
        $region42: #{tpu_custom_call.1} parent=39 // pred_check_branch
          %276 = sbr.rel (%p274) target = $region44
        $region43: #{tpu_custom_call.1} parent=39 // pred_region
          %s277 = sand.u32 %s31, 1
          %s278 = scalar_lea.sflag [#allocation5], %s277
          %s279 = sand.u32 %s31, 1
          %s280 = smul.addr %s279, 4
          %s281 = scalar_lea.vmem [#allocation4], %s280
          %283 = vsyncadd %s278, 0
          %s284 = smul.addr %s21, 2
          %s285 = smul.addr %s284, 2
          %s286 = scalar_lea.hbm %s0, %s285
          %s288 = sshll.u32 %s286, 4
          %s289 = int_to_ptr.hbm [resolvable:$true] %s288
          %s290 = sshll.u32 %s281, 4
          %s291 = int_to_ptr.vmem [resolvable:$true] %s290
          %293 = dma.hbm_to_vmem [thread:$0]  %s289, 64, %s291, %s278
        $region44: #{tpu_custom_call.1} parent=39 // pred_fallthru
          _
      $region40: #{tpu_custom_call.1} parent=5 // pred_fallthru
        _
      %p294 = scmp.le.s32.totalorder 1, %s21
      %p295 = scmp.lt.s32.totalorder %s21, 3
      %p296 = pnand %p294, %p295
      %p297 = pneg %p296
      // Predicated region
      $region45: #{tpu_custom_call.1} parent=5 // pred_check
        _
      $region46: #{tpu_custom_call.1} parent=5 // pred_check_branch
        %299 = sbr.rel (%p296) target = $region48
      $region47: #{tpu_custom_call.1} parent=5 // pred_region
        %s300 = ssub.s32 %s21, 1
        %s301 = sand.u32 %s34, 1
        %s302 = scalar_lea.sflag [#allocation5], %s301
        %s303 = sand.u32 %s34, 1
        %s304 = smul.addr %s303, 4
        %s305 = scalar_lea.vmem [#allocation4], %s304
        // Predicated region
        $region49: #{tpu_custom_call.1} parent=47 // pred_check
          %p306 = pneg %p47
        $region50: #{tpu_custom_call.1} parent=47 // pred_check_branch
          %308 = sbr.rel (%p306) target = $region52
        $region51: #{tpu_custom_call.1} parent=47 // pred_region
          %310 = dma.done %s302, 64
        $region52: #{tpu_custom_call.1} parent=47 // pred_fallthru
          _
        // Predicated region
        $region53: #{tpu_custom_call.1} parent=47 // pred_check
          %p311 = pneg %p68
        $region54: #{tpu_custom_call.1} parent=47 // pred_check_branch
          %313 = sbr.rel (%p311) target = $region56
        $region55: #{tpu_custom_call.1} parent=47 // pred_region
          %315 = dma.done [#allocation8], 512
        $region56: #{tpu_custom_call.1} parent=47 // pred_fallthru
          _
        // Predicated region
        $region57: #{tpu_custom_call.1} parent=47 // pred_check
          %p316 = pneg %p89
        $region58: #{tpu_custom_call.1} parent=47 // pred_check_branch
          %318 = sbr.rel (%p316) target = $region60
        $region59: #{tpu_custom_call.1} parent=47 // pred_region
          %320 = dma.done [#allocation8], 32
        $region60: #{tpu_custom_call.1} parent=47 // pred_fallthru
          _
        // Predicated region
        $region61: #{tpu_custom_call.1} parent=47 // pred_check
          %p321 = pneg %p131
        $region62: #{tpu_custom_call.1} parent=47 // pred_check_branch
          %323 = sbr.rel (%p321) target = $region64
        $region63: #{tpu_custom_call.1} parent=47 // pred_region
          %325 = dma.done [#allocation11], 16
        $region64: #{tpu_custom_call.1} parent=47 // pred_fallthru
          _
        // Predicated region
        $region65: #{tpu_custom_call.1} parent=47 // pred_check
          %p326 = pneg %p152
        $region66: #{tpu_custom_call.1} parent=47 // pred_check_branch
          %328 = sbr.rel (%p326) target = $region68
        $region67: #{tpu_custom_call.1} parent=47 // pred_region
          %330 = dma.done [#allocation11], 16
        $region68: #{tpu_custom_call.1} parent=47 // pred_fallthru
          _
        %s331 = sand.u32 %s34, 1
        %s332 = scalar_lea.sflag [#allocation5], %s331
        %s333 = sand.u32 %s34, 1
        %s334 = smul.addr %s333, 4
        %s335 = scalar_lea.vmem [#allocation4], %s334
        %p336 = pneg %p47
        %p337 = pneg %p44
        %p338 = pneg %p68
        %p339 = pneg %p65
        %p340 = pneg %p89
        %p341 = pneg %p86
        %p342 = pneg %p110
        %p343 = pneg %p107
        %p344 = pneg %p131
        %p345 = pneg %p128
        %p346 = pneg %p152
        %p347 = pneg %p149
        %p348 = pneg %p173
        %p349 = pneg %p170
        %p350 = pneg %p199
        %p351 = pneg %p196
        %s352 = sand.u32 %s186, 1
        %s353 = scalar_lea.sflag [#allocation6], %s352
        %s354 = sand.u32 %s186, 1
        %s355 = smul.addr %s354, 8
        %s356 = scalar_lea.vmem [#allocation13], %s355
        %v359 = vld [vmem:[%s305] sm:$0xf]
        %v360 = vld [vmem:[#allocation7] sm:$0xff]
        %v361 = vld [vmem:[#allocation7 + $0x8] sm:$0xff]
        %v362 = vld [vmem:[#allocation7 + $0x10] sm:$0x7]
        %v363 = vld [vmem:[#allocation7 + $0x18] sm:$0x7]
        %v364 = vld [vmem:[%s6] sm:$0x3]
        %v365 = vunpack.c.l.bf16 %v359
        %367 = vst [vmem:[#allocation1] ss:$2 sm:$0xff] %v365
        %v368 = vld.sshfl [vmem:[#allocation1] sm:$0xff pattern:$0x75316420]
        %v369 = vld.sshfl [vmem:[#allocation1 + $0x8] sm:$0xff pattern:$0x75316420]
        %372 = vrot.lane.b32.xlu0 %v368, 17
        %v373 = vpop.permute.xlu0 %372
        %374 = vrot.lane.b32.xlu0 %v369, 17
        %v375 = vpop.permute.xlu0 %374
        %v376 = vlaneseq
        %v377 = vand.u32 %v376, 127
        %vm378 = vcmp.lt.s32.totalorder %v377, 17
        %v379 = vsel %vm378, %v373, %v375
        %v380 = vsel %vm378, %v375, %v373
        %v381 = vperm.slane %v360, 0
        %v382 = vperm.slane %v361, 0
        %v383 = vmul.f32 %v380, %v381
        %v384 = vmul.f32 %v379, %v382
        %v385 = vpack.c.bf16 %v384, %v383
        %386 = vst [vmem:[#allocation2] sm:$0x33] %v385
        %387 = vst [vmem:[#allocation2] sm:$0xcc] 0
        %388 = vst [vmem:[#allocation2 + $0x8] sm:$0xff] 0
        %389 = vst [vmem:[#allocation1] ss:$2 sm:$0xff] %v365
        %v390 = vld.sshfl [vmem:[#allocation1] sm:$0xff pattern:$0x75316420]
        %v391 = vld.sshfl [vmem:[#allocation1 + $0x8] sm:$0xff pattern:$0x75316420]
        %394 = vrot.lane.b32.xlu0 %v390, 16
        %v395 = vpop.permute.xlu0 %394
        %396 = vrot.lane.b32.xlu0 %v391, 16
        %v397 = vpop.permute.xlu0 %396
        %vm398 = vcmp.lt.s32.totalorder %v377, 16
        %v399 = vsel %vm398, %v395, %v397
        %v400 = vsel %vm398, %v397, %v395
        %v401 = vperm.slane %v360, 1
        %v402 = vperm.slane %v361, 1
        %v403 = vmul.f32 %v400, %v401
        %v404 = vmul.f32 %v399, %v402
        %v405 = vpack.c.bf16 %v404, %v403
        %406 = vst [vmem:[#allocation2 + $0x10] sm:$0x33] %v405
        %407 = vst [vmem:[#allocation2 + $0x10] sm:$0xcc] 0
        %408 = vst [vmem:[#allocation2 + $0x18] sm:$0xff] 0
        %409 = vst [vmem:[#allocation1] ss:$2 sm:$0xff] %v365
        %v410 = vld.sshfl [vmem:[#allocation1] sm:$0xff pattern:$0x75316420]
        %v411 = vld.sshfl [vmem:[#allocation1 + $0x8] sm:$0xff pattern:$0x75316420]
        %414 = vrot.lane.b32.xlu0 %v410, 15
        %v415 = vpop.permute.xlu0 %414
        %416 = vrot.lane.b32.xlu0 %v411, 15
        %v417 = vpop.permute.xlu0 %416
        %vm418 = vcmp.lt.s32.totalorder %v377, 15
        %v419 = vsel %vm418, %v415, %v417
        %v420 = vsel %vm418, %v417, %v415
        %v421 = vperm.slane %v360, 2
        %v422 = vperm.slane %v361, 2
        %v423 = vmul.f32 %v420, %v421
        %v424 = vmul.f32 %v419, %v422
        %v425 = vpack.c.bf16 %v424, %v423
        %426 = vst [vmem:[#allocation2 + $0x20] sm:$0x33] %v425
        %427 = vst [vmem:[#allocation2 + $0x20] sm:$0xcc] 0
        %428 = vst [vmem:[#allocation2 + $0x28] sm:$0xff] 0
        %429 = vst [vmem:[#allocation1] ss:$2 sm:$0xff] %v365
        %v430 = vld.sshfl [vmem:[#allocation1] sm:$0xff pattern:$0x75316420]
        %v431 = vld.sshfl [vmem:[#allocation1 + $0x8] sm:$0xff pattern:$0x75316420]
        %434 = vrot.lane.b32.xlu0 %v430, 1
        %v435 = vpop.permute.xlu0 %434
        %436 = vrot.lane.b32.xlu0 %v431, 1
        %v437 = vpop.permute.xlu0 %436
        %vm438 = vcmp.lt.s32.totalorder %v377, 1
        %v439 = vsel %vm438, %v435, %v437
        %v440 = vsel %vm438, %v437, %v435
        %v441 = vperm.slane %v360, 3
        %v442 = vperm.slane %v361, 3
        %v443 = vmul.f32 %v440, %v441
        %v444 = vmul.f32 %v439, %v442
        %v445 = vpack.c.bf16 %v444, %v443
        %446 = vst [vmem:[#allocation2 + $0x30] sm:$0x33] %v445
        %447 = vst [vmem:[#allocation2 + $0x30] sm:$0xcc] 0
        %448 = vst [vmem:[#allocation2 + $0x38] sm:$0xff] 0
        %v449 = vperm.slane %v360, 4
        %v450 = vperm.slane %v361, 4
        %v453 = vrot.slane %v450, 4
        %vm454 = vcmask 1043456
        %v455 = vsel %vm454, %v449, %v453
        %v457 = vmul.f32 %v365, %v455
        %459 = vst [vmem:[#allocation1] ss:$2 sm:$0xff] %v457
        %v460 = vld.sshfl [vmem:[#allocation1] sm:$0xff pattern:$0x75316420]
        %v461 = vld.sshfl [vmem:[#allocation1 + $0x8] sm:$0xff pattern:$0x75316420]
        %v464 = vpack.c.bf16 %v461, %v460
        %465 = vst [vmem:[#allocation2 + $0x40] sm:$0x33] %v464
        %466 = vst [vmem:[#allocation2 + $0x40] sm:$0xcc] 0
        %467 = vst [vmem:[#allocation2 + $0x48] sm:$0xff] 0
        %468 = vst [vmem:[#allocation1] ss:$2 sm:$0xff] %v365
        %v469 = vld.sshfl [vmem:[#allocation1] sm:$0xff pattern:$0x75316420]
        %v470 = vld.sshfl [vmem:[#allocation1 + $0x8] sm:$0xff pattern:$0x75316420]
        %473 = vrot.lane.b32.xlu0 %v469, 127
        %v474 = vpop.permute.xlu0 %473
        %475 = vrot.lane.b32.xlu0 %v470, 127
        %v476 = vpop.permute.xlu0 %475
        %vm477 = vcmp.lt.s32.totalorder %v377, 127
        %v478 = vsel %vm477, %v474, %v476
        %v479 = vsel %vm477, %v476, %v474
        %v480 = vperm.slane %v360, 5
        %v481 = vperm.slane %v361, 5
        %v482 = vmul.f32 %v478, %v480
        %v483 = vmul.f32 %v479, %v481
        %v484 = vpack.c.bf16 %v483, %v482
        %485 = vst [vmem:[#allocation2 + $0x50] sm:$0x33] %v484
        %486 = vst [vmem:[#allocation2 + $0x50] sm:$0xcc] 0
        %487 = vst [vmem:[#allocation2 + $0x58] sm:$0xff] 0
        %488 = vst [vmem:[#allocation1] ss:$2 sm:$0xff] %v365
        %v489 = vld.sshfl [vmem:[#allocation1] sm:$0xff pattern:$0x75316420]
        %v490 = vld.sshfl [vmem:[#allocation1 + $0x8] sm:$0xff pattern:$0x75316420]
        %493 = vrot.lane.b32.xlu0 %v489, 113
        %v494 = vpop.permute.xlu0 %493
        %495 = vrot.lane.b32.xlu0 %v490, 113
        %v496 = vpop.permute.xlu0 %495
        %vm497 = vcmp.lt.s32.totalorder %v377, 113
        %v498 = vsel %vm497, %v494, %v496
        %v499 = vsel %vm497, %v496, %v494
        %v500 = vperm.slane %v360, 6
        %v501 = vperm.slane %v361, 6
        %v502 = vmul.f32 %v498, %v500
        %v503 = vmul.f32 %v499, %v501
        %v504 = vpack.c.bf16 %v503, %v502
        %505 = vst [vmem:[#allocation2 + $0x60] sm:$0x33] %v504
        %506 = vst [vmem:[#allocation2 + $0x60] sm:$0xcc] 0
        %507 = vst [vmem:[#allocation2 + $0x68] sm:$0xff] 0
        %508 = vst [vmem:[#allocation1] ss:$2 sm:$0xff] %v365
        %v509 = vld.sshfl [vmem:[#allocation1] sm:$0xff pattern:$0x75316420]
        %v510 = vld.sshfl [vmem:[#allocation1 + $0x8] sm:$0xff pattern:$0x75316420]
        %513 = vrot.lane.b32.xlu0 %v509, 112
        %v514 = vpop.permute.xlu0 %513
        %515 = vrot.lane.b32.xlu0 %v510, 112
        %v516 = vpop.permute.xlu0 %515
        %vm517 = vcmp.lt.s32.totalorder %v377, 112
        %v518 = vsel %vm517, %v514, %v516
        %v519 = vsel %vm517, %v516, %v514
        %v520 = vperm.slane %v360, 7
        %v521 = vperm.slane %v361, 7
        %v522 = vmul.f32 %v518, %v520
        %v523 = vmul.f32 %v519, %v521
        %v524 = vpack.c.bf16 %v523, %v522
        %525 = vst [vmem:[#allocation2 + $0x70] sm:$0x33] %v524
        %526 = vst [vmem:[#allocation2 + $0x70] sm:$0xcc] 0
        %527 = vst [vmem:[#allocation2 + $0x78] sm:$0xff] 0
        %528 = vst [vmem:[#allocation1] ss:$2 sm:$0xff] %v365
        %v529 = vld.sshfl [vmem:[#allocation1] sm:$0xff pattern:$0x75316420]
        %v530 = vld.sshfl [vmem:[#allocation1 + $0x8] sm:$0xff pattern:$0x75316420]
        %533 = vrot.lane.b32.xlu0 %v529, 111
        %v534 = vpop.permute.xlu0 %533
        %535 = vrot.lane.b32.xlu0 %v530, 111
        %v536 = vpop.permute.xlu0 %535
        %vm537 = vcmp.lt.s32.totalorder %v377, 111
        %v538 = vsel %vm537, %v534, %v536
        %v539 = vsel %vm537, %v536, %v534
        %v540 = vperm.slane %v362, 0
        %v541 = vperm.slane %v363, 0
        %v542 = vmul.f32 %v538, %v540
        %v543 = vmul.f32 %v539, %v541
        %v544 = vpack.c.bf16 %v543, %v542
        %545 = vst [vmem:[#allocation2 + $0x80] sm:$0x33] %v544
        %546 = vst [vmem:[#allocation2 + $0x80] sm:$0xcc] 0
        %547 = vst [vmem:[#allocation2 + $0x88] sm:$0xff] 0
        %vm548 = vcmask 1040384
        %vm549 = vsmask.f32 256
        %vm550 = vmand %vm548, %vm549
        %vm551 = vcmask 1044484
        %vm552 = vsmask.f32 4352
        %vm553 = vmand %vm551, %vm552
        %vm554 = vmor %vm553, %vm550
        %v555 = vld [vmem:[#allocation2 + $0x90] sm:$0x11]
        %v556 = vsel %vm554, 1065369472, %v555
        %557 = vst [vmem:[#allocation2 + $0x90] sm:$0x11] %v556
        %vm558 = vcmask 1043456
        %vm559 = vsmask.f32 7938
        %vm560 = vmand %vm558, %vm559
        %vm561 = vcmask 1047556
        %vm562 = vsmask.f32 7954
        %vm563 = vmand %vm561, %vm562
        %vm564 = vmor %vm563, %vm560
        %v565 = vld [vmem:[#allocation2 + $0x90] sm:$0xff]
        %v566 = vsel %vm564, 0, %v565
        %567 = vst [vmem:[#allocation2 + $0x90] sm:$0xff] %v566
        %568 = vst [vmem:[#allocation2 + $0x98] sm:$0xff] 0
        %v569 = vld [vmem:[#allocation9] sm:$0x3]
        %v570 = vld [vmem:[#allocation2] sm:$0xff]
        %v571 = vld [vmem:[#allocation2 + $0x8] sm:$0xff]
        %v572 = vld [vmem:[#allocation2 + $0x10] sm:$0xff]
        %v573 = vld [vmem:[#allocation2 + $0x18] sm:$0xff]
        %v574 = vld [vmem:[#allocation2 + $0x20] sm:$0xff]
        %v575 = vld [vmem:[#allocation2 + $0x28] sm:$0xff]
        %v576 = vld [vmem:[#allocation2 + $0x30] sm:$0xff]
        %v577 = vld [vmem:[#allocation2 + $0x38] sm:$0xff]
        %v578 = vld [vmem:[#allocation2 + $0x40] sm:$0xff]
        %v579 = vld [vmem:[#allocation2 + $0x48] sm:$0xff]
        %v580 = vld [vmem:[#allocation2 + $0x50] sm:$0xff]
        %v581 = vld [vmem:[#allocation2 + $0x58] sm:$0xff]
        %v582 = vld [vmem:[#allocation2 + $0x60] sm:$0xff]
        %v583 = vld [vmem:[#allocation2 + $0x68] sm:$0xff]
        %v584 = vld [vmem:[#allocation2 + $0x70] sm:$0xff]
        %v585 = vld [vmem:[#allocation2 + $0x78] sm:$0xff]
        %v586 = vld [vmem:[#allocation2 + $0x80] sm:$0xff]
        %v587 = vld [vmem:[#allocation2 + $0x88] sm:$0xff]
        %v588 = vld [vmem:[#allocation2 + $0x90] sm:$0xff]
        %v589 = vld [vmem:[#allocation2 + $0x98] sm:$0xff]
        %591 = vst [vmem:[#allocation1] ss:$9 sm:$0xff] %v569
        %v592 = vld [vmem:[#allocation1] sm:$0xff]
        %v593 = vld [vmem:[#allocation1 + $0x9] sm:$0xff]
        %v615 = vunpack.c.l.b16 %v570
        %v616 = vunpack.c.h.b16 %v570
        %v617 = vunpack.c.l.b16 %v571
        %v618 = vunpack.c.h.b16 %v571
        %v619 = vunpack.c.l.b16 %v572
        %v620 = vunpack.c.h.b16 %v572
        %v621 = vunpack.c.l.b16 %v573
        %v622 = vunpack.c.h.b16 %v573
        %v623 = vunpack.c.l.b16 %v574
        %v624 = vunpack.c.h.b16 %v574
        %v625 = vunpack.c.l.b16 %v575
        %v626 = vunpack.c.h.b16 %v575
        %v627 = vunpack.c.l.b16 %v576
        %v628 = vunpack.c.h.b16 %v576
        %v629 = vunpack.c.l.b16 %v577
        %v630 = vunpack.c.h.b16 %v577
        %v631 = vunpack.c.l.b16 %v578
        %v632 = vunpack.c.h.b16 %v578
        %v633 = vunpack.c.l.b16 %v579
        %v634 = vunpack.c.h.b16 %v579
        %v635 = vunpack.c.l.b16 %v580
        %v636 = vunpack.c.h.b16 %v580
        %v637 = vunpack.c.l.b16 %v581
        %v638 = vunpack.c.h.b16 %v581
        %v639 = vunpack.c.l.b16 %v582
        %v640 = vunpack.c.h.b16 %v582
        %v641 = vunpack.c.l.b16 %v583
        %v642 = vunpack.c.h.b16 %v583
        %v643 = vunpack.c.l.b16 %v584
        %v644 = vunpack.c.h.b16 %v584
        %v645 = vunpack.c.l.b16 %v585
        %v646 = vunpack.c.h.b16 %v585
        %v647 = vunpack.c.l.b16 %v586
        %v648 = vunpack.c.h.b16 %v586
        %v649 = vunpack.c.l.b16 %v587
        %v650 = vunpack.c.h.b16 %v587
        %v651 = vunpack.c.l.b16 %v588
        %v652 = vunpack.c.h.b16 %v588
        %v653 = vunpack.c.l.b16 %v589
        %v654 = vunpack.c.h.b16 %v589
        %v655 = vpack.c.b16 %v617, %v615
        %v656 = vpack.c.b16 %v618, %v616
        %v657 = vpack.c.b16 %v621, %v619
        %v658 = vpack.c.b16 %v622, %v620
        %v659 = vpack.c.b16 %v625, %v623
        %v660 = vpack.c.b16 %v626, %v624
        %v661 = vpack.c.b16 %v629, %v627
        %v662 = vpack.c.b16 %v630, %v628
        %v663 = vpack.c.b16 %v633, %v631
        %v664 = vpack.c.b16 %v634, %v632
        %v665 = vpack.c.b16 %v637, %v635
        %v666 = vpack.c.b16 %v638, %v636
        %v667 = vpack.c.b16 %v641, %v639
        %v668 = vpack.c.b16 %v642, %v640
        %v669 = vpack.c.b16 %v645, %v643
        %v670 = vpack.c.b16 %v646, %v644
        %v671 = vpack.c.b16 %v649, %v647
        %v672 = vpack.c.b16 %v650, %v648
        %v673 = vpack.c.b16 %v653, %v651
        %v674 = vpack.c.b16 %v654, %v652
        %vm695 = vcmask 261120
        %v696 = vsel %vm695, %v593, 0
        %698 = vmatpush.bf16.msra.mxu0 %v669
        %699 = vmatpush.bf16.msra.mxu0 %v667
        %700 = vmatpush.bf16.msra.mxu0 %v665
        %701 = vmatpush.bf16.msra.mxu0 %v663
        %702 = vmatpush.bf16.msra.mxu0 %v661
        %703 = vmatpush.bf16.msra.mxu0 %v659
        %704 = vmatpush.bf16.msra.mxu0 %v657
        %705 = vmatpush.bf16.msra.mxu0 %v655
        %706 = vmatmul.bf16.gmra.mxu0 %v592
        %v707 = vpop.f32.mrf.mxu0
        %v708 = vadd.f32 0.0, %v707
        %v709 = vpop.f32.mrf.mxu0
        %710 = vdwg.mxu0
        %711 = vmatpush.bf16.msra.mxu0 0
        %712 = vmatpush.bf16.msra.mxu0 0
        %713 = vmatpush.bf16.msra.mxu0 0
        %714 = vmatpush.bf16.msra.mxu0 0
        %715 = vmatpush.bf16.msra.mxu0 0
        %716 = vmatpush.bf16.msra.mxu0 0
        %717 = vmatpush.bf16.msra.mxu0 %v673
        %718 = vmatpush.bf16.msra.mxu0 %v671
        %719 = vmatmul.bf16.gmra.mxu0 %v696
        %v720 = vpop.f32.mrf.mxu0
        %v721 = vadd.f32 %v708, %v720
        %v722 = vpop.f32.mrf.mxu0
        %723 = vdwg.mxu0
        %724 = vmatpush.bf16.msra.mxu0 %v670
        %725 = vmatpush.bf16.msra.mxu0 %v668
        %726 = vmatpush.bf16.msra.mxu0 %v666
        %727 = vmatpush.bf16.msra.mxu0 %v664
        %728 = vmatpush.bf16.msra.mxu0 %v662
        %729 = vmatpush.bf16.msra.mxu0 %v660
        %730 = vmatpush.bf16.msra.mxu0 %v658
        %731 = vmatpush.bf16.msra.mxu0 %v656
        %732 = vmatmul.bf16.gmra.mxu0 %v592
        %v733 = vpop.f32.mrf.mxu0
        %v734 = vadd.f32 0.0, %v733
        %v735 = vpop.f32.mrf.mxu0
        %736 = vdwg.mxu0
        %737 = vmatpush.bf16.msra.mxu0 0
        %738 = vmatpush.bf16.msra.mxu0 0
        %739 = vmatpush.bf16.msra.mxu0 0
        %740 = vmatpush.bf16.msra.mxu0 0
        %741 = vmatpush.bf16.msra.mxu0 0
        %742 = vmatpush.bf16.msra.mxu0 0
        %743 = vmatpush.bf16.msra.mxu0 %v674
        %744 = vmatpush.bf16.msra.mxu0 %v672
        %745 = vmatmul.bf16.gmra.mxu0 %v696
        %v746 = vpop.f32.mrf.mxu0
        %v747 = vadd.f32 %v734, %v746
        %v748 = vpop.f32.mrf.mxu0
        %749 = vdwg.mxu0
        %v750 = vxor.u32 %v721, 2147483648
        %v751 = vxor.u32 %v747, 2147483648
        %v752 = vmul.f32 %v750, 1.442695
        %v753 = vpow.pop %v752
        %v754 = vmul.f32 %v751, 1.442695
        %v755 = vpow.pop %v754
        %v756 = vadd.f32 %v753, 1.0
        %v757 = vadd.f32 %v755, 1.0
        %v758 = vrcp.pop %v756
        %v759 = vmul.f32 %v756, %v758
        %v760 = vsub.f32 1.0, %v759
        %v761 = vmul.f32 %v758, %v760
        %v762 = vadd.f32 %v758, %v761
        %vm763 = vweird.f32 %v756
        %vm764 = vweird.f32 %v758
        %vm765 = vmor %vm763, %vm764
        %v766 = vsel %vm765, %v758, %v762
        %v767 = vand.u32 2147483647, %v756
        %vm768 = vcmp.eq.f32.partialorder %v767, 8.507059e+37
        %v769 = vand.u32 %v756, 2147483648
        %v770 = vor.u32 1.1754944e-38, %v769
        %v771 = vsel %vm768, %v770, %v766
        %v772 = vmul.f32 1.0, %v771
        %v773 = vrcp.pop %v757
        %v774 = vmul.f32 %v757, %v773
        %v775 = vsub.f32 1.0, %v774
        %v776 = vmul.f32 %v773, %v775
        %v777 = vadd.f32 %v773, %v776
        %vm778 = vweird.f32 %v757
        %vm779 = vweird.f32 %v773
        %vm780 = vmor %vm778, %vm779
        %v781 = vsel %vm780, %v773, %v777
        %v782 = vand.u32 2147483647, %v757
        %vm783 = vcmp.eq.f32.partialorder %v782, 8.507059e+37
        %v784 = vand.u32 %v757, 2147483648
        %v785 = vor.u32 1.1754944e-38, %v784
        %v786 = vsel %vm783, %v785, %v781
        %v787 = vmul.f32 1.0, %v786
        %v788 = vmul.f32 %v721, %v772
        %v789 = vmul.f32 %v747, %v787
        %791 = vset.pattern.permute.xlu0 0
        %792 = vperm.xlu0 %791, %v364
        %v793 = vpop.permute.xlu0 %792
        %v795 = vmul.f32 %v788, %v793
        %v796 = vmul.f32 %v789, %v793
        %797 = vset.pattern.permute.xlu0 1
        %798 = vperm.xlu0 %797, %v364
        %v799 = vpop.permute.xlu0 %798
        %v801 = vadd.f32 %v795, %v799
        %v802 = vadd.f32 %v796, %v799
        %v803 = vmax.f32 %v801, 0.0
        %v804 = vmax.f32 %v802, 0.0
        %805 = vrot.lane.b32.xlu0 %v803, 17
        %v806 = vpop.permute.xlu0 %805
        %807 = vrot.lane.b32.xlu0 %v804, 17
        %v808 = vpop.permute.xlu0 %807
        %v809 = vsel %vm378, %v806, %v808
        %v810 = vsel %vm378, %v808, %v806
        %v811 = vmul.f32 %v810, %v381
        %v812 = vmul.f32 %v809, %v382
        %v813 = vpack.c.bf16 %v812, %v811
        %814 = vst [vmem:[#allocation2] sm:$0x11] %v813
        %815 = vst [vmem:[#allocation2] sm:$0xee] 0
        %816 = vst [vmem:[#allocation2 + $0x8] sm:$0xff] 0
        %817 = vrot.lane.b32.xlu0 %v803, 16
        %v818 = vpop.permute.xlu0 %817
        %819 = vrot.lane.b32.xlu0 %v804, 16
        %v820 = vpop.permute.xlu0 %819
        %v821 = vsel %vm398, %v818, %v820
        %v822 = vsel %vm398, %v820, %v818
        %v823 = vmul.f32 %v822, %v401
        %v824 = vmul.f32 %v821, %v402
        %v825 = vpack.c.bf16 %v824, %v823
        %826 = vst [vmem:[#allocation2 + $0x10] sm:$0x11] %v825
        %827 = vst [vmem:[#allocation2 + $0x10] sm:$0xee] 0
        %828 = vst [vmem:[#allocation2 + $0x18] sm:$0xff] 0
        %829 = vrot.lane.b32.xlu0 %v803, 15
        %v830 = vpop.permute.xlu0 %829
        %831 = vrot.lane.b32.xlu0 %v804, 15
        %v832 = vpop.permute.xlu0 %831
        %v833 = vsel %vm418, %v830, %v832
        %v834 = vsel %vm418, %v832, %v830
        %v835 = vmul.f32 %v834, %v421
        %v836 = vmul.f32 %v833, %v422
        %v837 = vpack.c.bf16 %v836, %v835
        %838 = vst [vmem:[#allocation2 + $0x20] sm:$0x11] %v837
        %839 = vst [vmem:[#allocation2 + $0x20] sm:$0xee] 0
        %840 = vst [vmem:[#allocation2 + $0x28] sm:$0xff] 0
        %841 = vrot.lane.b32.xlu0 %v803, 1
        %v842 = vpop.permute.xlu0 %841
        %843 = vrot.lane.b32.xlu0 %v804, 1
        %v844 = vpop.permute.xlu0 %843
        %v845 = vsel %vm438, %v842, %v844
        %v846 = vsel %vm438, %v844, %v842
        %v847 = vmul.f32 %v846, %v441
        %v848 = vmul.f32 %v845, %v442
        %v849 = vpack.c.bf16 %v848, %v847
        %850 = vst [vmem:[#allocation2 + $0x30] sm:$0x11] %v849
        %851 = vst [vmem:[#allocation2 + $0x30] sm:$0xee] 0
        %852 = vst [vmem:[#allocation2 + $0x38] sm:$0xff] 0
        %v853 = vmul.f32 %v803, %v449
        %v854 = vmul.f32 %v804, %v450
        %v855 = vpack.c.bf16 %v854, %v853
        %856 = vst [vmem:[#allocation2 + $0x40] sm:$0x11] %v855
        %857 = vst [vmem:[#allocation2 + $0x40] sm:$0xee] 0
        %858 = vst [vmem:[#allocation2 + $0x48] sm:$0xff] 0
        %859 = vrot.lane.b32.xlu0 %v803, 127
        %v860 = vpop.permute.xlu0 %859
        %861 = vrot.lane.b32.xlu0 %v804, 127
        %v862 = vpop.permute.xlu0 %861
        %v863 = vsel %vm477, %v860, %v862
        %v864 = vsel %vm477, %v862, %v860
        %v865 = vmul.f32 %v863, %v480
        %v866 = vmul.f32 %v864, %v481
        %v867 = vpack.c.bf16 %v866, %v865
        %868 = vst [vmem:[#allocation2 + $0x50] sm:$0x11] %v867
        %869 = vst [vmem:[#allocation2 + $0x50] sm:$0xee] 0
        %870 = vst [vmem:[#allocation2 + $0x58] sm:$0xff] 0
        %871 = vrot.lane.b32.xlu0 %v803, 113
        %v872 = vpop.permute.xlu0 %871
        %873 = vrot.lane.b32.xlu0 %v804, 113
        %v874 = vpop.permute.xlu0 %873
        %v875 = vsel %vm497, %v872, %v874
        %v876 = vsel %vm497, %v874, %v872
        %v877 = vmul.f32 %v875, %v500
        %v878 = vmul.f32 %v876, %v501
        %v879 = vpack.c.bf16 %v878, %v877
        %880 = vst [vmem:[#allocation2 + $0x60] sm:$0x11] %v879
        %881 = vst [vmem:[#allocation2 + $0x60] sm:$0xee] 0
        %882 = vst [vmem:[#allocation2 + $0x68] sm:$0xff] 0
        %883 = vrot.lane.b32.xlu0 %v803, 112
        %v884 = vpop.permute.xlu0 %883
        %885 = vrot.lane.b32.xlu0 %v804, 112
        %v886 = vpop.permute.xlu0 %885
        %v887 = vsel %vm517, %v884, %v886
        %v888 = vsel %vm517, %v886, %v884
        %v889 = vmul.f32 %v887, %v520
        %v890 = vmul.f32 %v888, %v521
        %v891 = vpack.c.bf16 %v890, %v889
        %892 = vst [vmem:[#allocation2 + $0x70] sm:$0x11] %v891
        %893 = vst [vmem:[#allocation2 + $0x70] sm:$0xee] 0
        %894 = vst [vmem:[#allocation2 + $0x78] sm:$0xff] 0
        %895 = vrot.lane.b32.xlu0 %v803, 111
        %v896 = vpop.permute.xlu0 %895
        %897 = vrot.lane.b32.xlu0 %v804, 111
        %v898 = vpop.permute.xlu0 %897
        %v899 = vsel %vm537, %v896, %v898
        %v900 = vsel %vm537, %v898, %v896
        %v901 = vmul.f32 %v899, %v540
        %v902 = vmul.f32 %v900, %v541
        %v903 = vpack.c.bf16 %v902, %v901
        %904 = vst [vmem:[#allocation2 + $0x80] sm:$0x11] %v903
        %905 = vst [vmem:[#allocation2 + $0x80] sm:$0xee] 0
        %906 = vst [vmem:[#allocation2 + $0x88] sm:$0xff] 0
        %v907 = vld [vmem:[#allocation2 + $0x90] sm:$0x11]
        %v908 = vsel %vm554, 1065369472, %v907
        %909 = vst [vmem:[#allocation2 + $0x90] sm:$0x11] %v908
        %v910 = vld [vmem:[#allocation2 + $0x90] sm:$0xff]
        %v911 = vsel %vm564, 0, %v910
        %912 = vst [vmem:[#allocation2 + $0x90] sm:$0xff] %v911
        %913 = vst [vmem:[#allocation2 + $0x98] sm:$0xff] 0
        %v914 = vld [vmem:[%s3] sm:$0x3]
        %v915 = vld [vmem:[#allocation2] sm:$0xff]
        %v916 = vld [vmem:[#allocation2 + $0x8] sm:$0xff]
        %v917 = vld [vmem:[#allocation2 + $0x10] sm:$0xff]
        %v918 = vld [vmem:[#allocation2 + $0x18] sm:$0xff]
        %v919 = vld [vmem:[#allocation2 + $0x20] sm:$0xff]
        %v920 = vld [vmem:[#allocation2 + $0x28] sm:$0xff]
        %v921 = vld [vmem:[#allocation2 + $0x30] sm:$0xff]
        %v922 = vld [vmem:[#allocation2 + $0x38] sm:$0xff]
        %v923 = vld [vmem:[#allocation2 + $0x40] sm:$0xff]
        %v924 = vld [vmem:[#allocation2 + $0x48] sm:$0xff]
        %v925 = vld [vmem:[#allocation2 + $0x50] sm:$0xff]
        %v926 = vld [vmem:[#allocation2 + $0x58] sm:$0xff]
        %v927 = vld [vmem:[#allocation2 + $0x60] sm:$0xff]
        %v928 = vld [vmem:[#allocation2 + $0x68] sm:$0xff]
        %v929 = vld [vmem:[#allocation2 + $0x70] sm:$0xff]
        %v930 = vld [vmem:[#allocation2 + $0x78] sm:$0xff]
        %v931 = vld [vmem:[#allocation2 + $0x80] sm:$0xff]
        %v932 = vld [vmem:[#allocation2 + $0x88] sm:$0xff]
        %v933 = vld [vmem:[#allocation2 + $0x90] sm:$0xff]
        %v934 = vld [vmem:[#allocation2 + $0x98] sm:$0xff]
        %936 = vst [vmem:[#allocation1] ss:$9 sm:$0xff] %v914
        %v937 = vld [vmem:[#allocation1] sm:$0xff]
        %v938 = vld [vmem:[#allocation1 + $0x9] sm:$0xff]
        %v960 = vunpack.c.l.b16 %v915
        %v961 = vunpack.c.h.b16 %v915
        %v962 = vunpack.c.l.b16 %v916
        %v963 = vunpack.c.h.b16 %v916
        %v964 = vunpack.c.l.b16 %v917
        %v965 = vunpack.c.h.b16 %v917
        %v966 = vunpack.c.l.b16 %v918
        %v967 = vunpack.c.h.b16 %v918
        %v968 = vunpack.c.l.b16 %v919
        %v969 = vunpack.c.h.b16 %v919
        %v970 = vunpack.c.l.b16 %v920
        %v971 = vunpack.c.h.b16 %v920
        %v972 = vunpack.c.l.b16 %v921
        %v973 = vunpack.c.h.b16 %v921
        %v974 = vunpack.c.l.b16 %v922
        %v975 = vunpack.c.h.b16 %v922
        %v976 = vunpack.c.l.b16 %v923
        %v977 = vunpack.c.h.b16 %v923
        %v978 = vunpack.c.l.b16 %v924
        %v979 = vunpack.c.h.b16 %v924
        %v980 = vunpack.c.l.b16 %v925
        %v981 = vunpack.c.h.b16 %v925
        %v982 = vunpack.c.l.b16 %v926
        %v983 = vunpack.c.h.b16 %v926
        %v984 = vunpack.c.l.b16 %v927
        %v985 = vunpack.c.h.b16 %v927
        %v986 = vunpack.c.l.b16 %v928
        %v987 = vunpack.c.h.b16 %v928
        %v988 = vunpack.c.l.b16 %v929
        %v989 = vunpack.c.h.b16 %v929
        %v990 = vunpack.c.l.b16 %v930
        %v991 = vunpack.c.h.b16 %v930
        %v992 = vunpack.c.l.b16 %v931
        %v993 = vunpack.c.h.b16 %v931
        %v994 = vunpack.c.l.b16 %v932
        %v995 = vunpack.c.h.b16 %v932
        %v996 = vunpack.c.l.b16 %v933
        %v997 = vunpack.c.h.b16 %v933
        %v998 = vunpack.c.l.b16 %v934
        %v999 = vunpack.c.h.b16 %v934
        %v1000 = vpack.c.b16 %v962, %v960
        %v1001 = vpack.c.b16 %v963, %v961
        %v1002 = vpack.c.b16 %v966, %v964
        %v1003 = vpack.c.b16 %v967, %v965
        %v1004 = vpack.c.b16 %v970, %v968
        %v1005 = vpack.c.b16 %v971, %v969
        %v1006 = vpack.c.b16 %v974, %v972
        %v1007 = vpack.c.b16 %v975, %v973
        %v1008 = vpack.c.b16 %v978, %v976
        %v1009 = vpack.c.b16 %v979, %v977
        %v1010 = vpack.c.b16 %v982, %v980
        %v1011 = vpack.c.b16 %v983, %v981
        %v1012 = vpack.c.b16 %v986, %v984
        %v1013 = vpack.c.b16 %v987, %v985
        %v1014 = vpack.c.b16 %v990, %v988
        %v1015 = vpack.c.b16 %v991, %v989
        %v1016 = vpack.c.b16 %v994, %v992
        %v1017 = vpack.c.b16 %v995, %v993
        %v1018 = vpack.c.b16 %v998, %v996
        %v1019 = vpack.c.b16 %v999, %v997
        %v1040 = vsel %vm695, %v938, 0
        %1042 = vmatpush.bf16.msra.mxu0 %v1014
        %1043 = vmatpush.bf16.msra.mxu0 %v1012
        %1044 = vmatpush.bf16.msra.mxu0 %v1010
        %1045 = vmatpush.bf16.msra.mxu0 %v1008
        %1046 = vmatpush.bf16.msra.mxu0 %v1006
        %1047 = vmatpush.bf16.msra.mxu0 %v1004
        %1048 = vmatpush.bf16.msra.mxu0 %v1002
        %1049 = vmatpush.bf16.msra.mxu0 %v1000
        %1050 = vmatmul.bf16.gmra.mxu0 %v937
        %v1051 = vpop.f32.mrf.mxu0
        %v1052 = vadd.f32 0.0, %v1051
        %v1053 = vpop.f32.mrf.mxu0
        %1054 = vdwg.mxu0
        %1055 = vmatpush.bf16.msra.mxu0 0
        %1056 = vmatpush.bf16.msra.mxu0 0
        %1057 = vmatpush.bf16.msra.mxu0 0
        %1058 = vmatpush.bf16.msra.mxu0 0
        %1059 = vmatpush.bf16.msra.mxu0 0
        %1060 = vmatpush.bf16.msra.mxu0 0
        %1061 = vmatpush.bf16.msra.mxu0 %v1018
        %1062 = vmatpush.bf16.msra.mxu0 %v1016
        %1063 = vmatmul.bf16.gmra.mxu0 %v1040
        %v1064 = vpop.f32.mrf.mxu0
        %v1065 = vadd.f32 %v1052, %v1064
        %v1066 = vpop.f32.mrf.mxu0
        %1067 = vdwg.mxu0
        %1068 = vmatpush.bf16.msra.mxu0 %v1015
        %1069 = vmatpush.bf16.msra.mxu0 %v1013
        %1070 = vmatpush.bf16.msra.mxu0 %v1011
        %1071 = vmatpush.bf16.msra.mxu0 %v1009
        %1072 = vmatpush.bf16.msra.mxu0 %v1007
        %1073 = vmatpush.bf16.msra.mxu0 %v1005
        %1074 = vmatpush.bf16.msra.mxu0 %v1003
        %1075 = vmatpush.bf16.msra.mxu0 %v1001
        %1076 = vmatmul.bf16.gmra.mxu0 %v937
        %v1077 = vpop.f32.mrf.mxu0
        %v1078 = vadd.f32 0.0, %v1077
        %v1079 = vpop.f32.mrf.mxu0
        %1080 = vdwg.mxu0
        %1081 = vmatpush.bf16.msra.mxu0 0
        %1082 = vmatpush.bf16.msra.mxu0 0
        %1083 = vmatpush.bf16.msra.mxu0 0
        %1084 = vmatpush.bf16.msra.mxu0 0
        %1085 = vmatpush.bf16.msra.mxu0 0
        %1086 = vmatpush.bf16.msra.mxu0 0
        %1087 = vmatpush.bf16.msra.mxu0 %v1019
        %1088 = vmatpush.bf16.msra.mxu0 %v1017
        %1089 = vmatmul.bf16.gmra.mxu0 %v1040
        %v1090 = vpop.f32.mrf.mxu0
        %v1091 = vadd.f32 %v1078, %v1090
        %v1092 = vpop.f32.mrf.mxu0
        %1093 = vdwg.mxu0
        %v1094 = vxor.u32 %v1065, 2147483648
        %v1095 = vxor.u32 %v1091, 2147483648
        %v1096 = vmul.f32 %v1094, 1.442695
        %v1097 = vpow.pop %v1096
        %v1098 = vmul.f32 %v1095, 1.442695
        %v1099 = vpow.pop %v1098
        %v1100 = vadd.f32 %v1097, 1.0
        %v1101 = vadd.f32 %v1099, 1.0
        %v1102 = vrcp.pop %v1100
        %v1103 = vmul.f32 %v1100, %v1102
        %v1104 = vsub.f32 1.0, %v1103
        %v1105 = vmul.f32 %v1102, %v1104
        %v1106 = vadd.f32 %v1102, %v1105
        %vm1107 = vweird.f32 %v1100
        %vm1108 = vweird.f32 %v1102
        %vm1109 = vmor %vm1107, %vm1108
        %v1110 = vsel %vm1109, %v1102, %v1106
        %v1111 = vand.u32 2147483647, %v1100
        %vm1112 = vcmp.eq.f32.partialorder %v1111, 8.507059e+37
        %v1113 = vand.u32 %v1100, 2147483648
        %v1114 = vor.u32 1.1754944e-38, %v1113
        %v1115 = vsel %vm1112, %v1114, %v1110
        %v1116 = vmul.f32 1.0, %v1115
        %v1117 = vrcp.pop %v1101
        %v1118 = vmul.f32 %v1101, %v1117
        %v1119 = vsub.f32 1.0, %v1118
        %v1120 = vmul.f32 %v1117, %v1119
        %v1121 = vadd.f32 %v1117, %v1120
        %vm1122 = vweird.f32 %v1101
        %vm1123 = vweird.f32 %v1117
        %vm1124 = vmor %vm1122, %vm1123
        %v1125 = vsel %vm1124, %v1117, %v1121
        %v1126 = vand.u32 2147483647, %v1101
        %vm1127 = vcmp.eq.f32.partialorder %v1126, 8.507059e+37
        %v1128 = vand.u32 %v1101, 2147483648
        %v1129 = vor.u32 1.1754944e-38, %v1128
        %v1130 = vsel %vm1127, %v1129, %v1125
        %v1131 = vmul.f32 1.0, %v1130
        %v1132 = vmul.f32 %v1065, %v1116
        %v1133 = vmul.f32 %v1091, %v1131
        %v1134 = vld [vmem:[#allocation10] sm:$0x1]
        %1135 = vset.pattern.permute.xlu0 2
        %1136 = vperm.xlu0 %1135, %v364
        %v1137 = vpop.permute.xlu0 %1136
        %1140 = vst [vmem:[#allocation1] ss:$4 sm:$0xff] %v359
        %v1141 = vld.sshfl [vmem:[#allocation1] sm:$0xff pattern:$0x73625140]
        %v1142 = vld.sshfl [vmem:[#allocation1 + $0x8] sm:$0xff pattern:$0x73625140]
        %vm1143 = vcmask 31744
        %v1145 = vsel %vm1143, %v1134, 0
        %vm1147 = vcmask 1041408
        %v1148 = vsel %vm1147, %v1141, 0
        %v1150 = vsel %vm1147, %v1142, 0
        %1152 = vmatpush.bf16.msra.mxu0 0
        %1153 = vmatpush.bf16.msra.mxu0 0
        %1154 = vmatpush.bf16.msra.mxu0 0
        %1155 = vmatpush.bf16.msra.mxu0 0
        %1156 = vmatpush.bf16.msra.mxu0 0
        %1157 = vmatpush.bf16.msra.mxu0 0
        %1158 = vmatpush.bf16.msra.mxu0 0
        %1159 = vmatpush.bf16.msra.mxu0 %v1148
        %1160 = vmatmul.bf16.gmra.mxu0 %v1145
        %v1161 = vpop.f32.mrf.mxu0
        %v1162 = vadd.f32 %v1137, %v1161
        %v1163 = vpop.f32.mrf.mxu0
        %1164 = vdwg.mxu0
        %1165 = vmatpush.bf16.msra.mxu0 0
        %1166 = vmatpush.bf16.msra.mxu0 0
        %1167 = vmatpush.bf16.msra.mxu0 0
        %1168 = vmatpush.bf16.msra.mxu0 0
        %1169 = vmatpush.bf16.msra.mxu0 0
        %1170 = vmatpush.bf16.msra.mxu0 0
        %1171 = vmatpush.bf16.msra.mxu0 0
        %1172 = vmatpush.bf16.msra.mxu0 %v1150
        %1173 = vmatmul.bf16.gmra.mxu0 %v1145
        %v1174 = vpop.f32.mrf.mxu0
        %v1175 = vadd.f32 %v1137, %v1174
        %v1176 = vpop.f32.mrf.mxu0
        %1177 = vdwg.mxu0
        %v1178 = vxor.u32 %v1162, 2147483648
        %v1179 = vxor.u32 %v1175, 2147483648
        %v1180 = vmul.f32 %v1178, 1.442695
        %v1181 = vpow.pop %v1180
        %v1182 = vmul.f32 %v1179, 1.442695
        %v1183 = vpow.pop %v1182
        %v1184 = vadd.f32 %v1181, 1.0
        %v1185 = vadd.f32 %v1183, 1.0
        %v1186 = vrcp.pop %v1184
        %v1187 = vmul.f32 %v1184, %v1186
        %v1188 = vsub.f32 1.0, %v1187
        %v1189 = vmul.f32 %v1186, %v1188
        %v1190 = vadd.f32 %v1186, %v1189
        %vm1191 = vweird.f32 %v1184
        %vm1192 = vweird.f32 %v1186
        %vm1193 = vmor %vm1191, %vm1192
        %v1194 = vsel %vm1193, %v1186, %v1190
        %v1195 = vand.u32 2147483647, %v1184
        %vm1196 = vcmp.eq.f32.partialorder %v1195, 8.507059e+37
        %v1197 = vand.u32 %v1184, 2147483648
        %v1198 = vor.u32 1.1754944e-38, %v1197
        %v1199 = vsel %vm1196, %v1198, %v1194
        %v1200 = vmul.f32 1.0, %v1199
        %v1201 = vrcp.pop %v1185
        %v1202 = vmul.f32 %v1185, %v1201
        %v1203 = vsub.f32 1.0, %v1202
        %v1204 = vmul.f32 %v1201, %v1203
        %v1205 = vadd.f32 %v1201, %v1204
        %vm1206 = vweird.f32 %v1185
        %vm1207 = vweird.f32 %v1201
        %vm1208 = vmor %vm1206, %vm1207
        %v1209 = vsel %vm1208, %v1201, %v1205
        %v1210 = vand.u32 2147483647, %v1185
        %vm1211 = vcmp.eq.f32.partialorder %v1210, 8.507059e+37
        %v1212 = vand.u32 %v1185, 2147483648
        %v1213 = vor.u32 1.1754944e-38, %v1212
        %v1214 = vsel %vm1211, %v1213, %v1209
        %v1215 = vmul.f32 1.0, %v1214
        %v1216 = vmul.f32 %v1162, %v1200
        %v1217 = vmul.f32 %v1175, %v1215
        %1218 = vset.pattern.permute.xlu0 3
        %1219 = vperm.xlu0 %1218, %v364
        %v1220 = vpop.permute.xlu0 %1219
        %v1222 = vmul.f32 %v1216, %v1220
        %v1223 = vmul.f32 %v1217, %v1220
        %1224 = vset.pattern.permute.xlu0 4
        %1225 = vperm.xlu0 %1224, %v364
        %v1226 = vpop.permute.xlu0 %1225
        %v1228 = vadd.f32 %v1222, %v1226
        %v1229 = vadd.f32 %v1223, %v1226
        %v1230 = vmax.f32 %v1228, 0.0
        %v1231 = vmax.f32 %v1229, 0.0
        %v1232 = vld [vmem:[#allocation12] sm:$0x1]
        %v1233 = vpack.c.bf16 %v1230, %v1230
        %v1234 = vpack.c.bf16 %v1231, %v1231
        %1235 = vset.pattern.permute.xlu0 5
        %1236 = vperm.xlu0 %1235, %v364
        %v1237 = vpop.permute.xlu0 %1236
        %vm1239 = vcmask 15360
        %v1241 = vsel %vm1239, %v1232, 0
        %vm1243 = vcmask 1040384
        %v1245 = vsel %vm1243, %v1233, 0
        %v1248 = vsel %vm1243, %v1234, 0
        %1250 = vmatpush.bf16.msra.mxu0 0
        %1251 = vmatpush.bf16.msra.mxu0 0
        %1252 = vmatpush.bf16.msra.mxu0 0
        %1253 = vmatpush.bf16.msra.mxu0 0
        %1254 = vmatpush.bf16.msra.mxu0 0
        %1255 = vmatpush.bf16.msra.mxu0 0
        %1256 = vmatpush.bf16.msra.mxu0 0
        %1257 = vmatpush.bf16.msra.mxu0 %v1245
        %1258 = vmatmul.bf16.gmra.mxu0 %v1241
        %v1259 = vpop.f32.mrf.mxu0
        %v1260 = vadd.f32 %v1237, %v1259
        %v1261 = vpop.f32.mrf.mxu0
        %1262 = vdwg.mxu0
        %1263 = vmatpush.bf16.msra.mxu0 0
        %1264 = vmatpush.bf16.msra.mxu0 0
        %1265 = vmatpush.bf16.msra.mxu0 0
        %1266 = vmatpush.bf16.msra.mxu0 0
        %1267 = vmatpush.bf16.msra.mxu0 0
        %1268 = vmatpush.bf16.msra.mxu0 0
        %1269 = vmatpush.bf16.msra.mxu0 0
        %1270 = vmatpush.bf16.msra.mxu0 %v1248
        %1271 = vmatmul.bf16.gmra.mxu0 %v1241
        %v1272 = vpop.f32.mrf.mxu0
        %v1273 = vadd.f32 %v1237, %v1272
        %v1274 = vpop.f32.mrf.mxu0
        %1275 = vdwg.mxu0
        %v1276 = vxor.u32 %v1260, 2147483648
        %v1277 = vxor.u32 %v1273, 2147483648
        %v1278 = vmul.f32 %v1276, 1.442695
        %v1279 = vpow.pop %v1278
        %v1280 = vmul.f32 %v1277, 1.442695
        %v1281 = vpow.pop %v1280
        %v1282 = vadd.f32 %v1279, 1.0
        %v1283 = vadd.f32 %v1281, 1.0
        %v1284 = vrcp.pop %v1282
        %v1285 = vmul.f32 %v1282, %v1284
        %v1286 = vsub.f32 1.0, %v1285
        %v1287 = vmul.f32 %v1284, %v1286
        %v1288 = vadd.f32 %v1284, %v1287
        %vm1289 = vweird.f32 %v1282
        %vm1290 = vweird.f32 %v1284
        %vm1291 = vmor %vm1289, %vm1290
        %v1292 = vsel %vm1291, %v1284, %v1288
        %v1293 = vand.u32 2147483647, %v1282
        %vm1294 = vcmp.eq.f32.partialorder %v1293, 8.507059e+37
        %v1295 = vand.u32 %v1282, 2147483648
        %v1296 = vor.u32 1.1754944e-38, %v1295
        %v1297 = vsel %vm1294, %v1296, %v1292
        %v1298 = vmul.f32 1.0, %v1297
        %v1299 = vrcp.pop %v1283
        %v1300 = vmul.f32 %v1283, %v1299
        %v1301 = vsub.f32 1.0, %v1300
        %v1302 = vmul.f32 %v1299, %v1301
        %v1303 = vadd.f32 %v1299, %v1302
        %vm1304 = vweird.f32 %v1283
        %vm1305 = vweird.f32 %v1299
        %vm1306 = vmor %vm1304, %vm1305
        %v1307 = vsel %vm1306, %v1299, %v1303
        %v1308 = vand.u32 2147483647, %v1283
        %vm1309 = vcmp.eq.f32.partialorder %v1308, 8.507059e+37
        %v1310 = vand.u32 %v1283, 2147483648
        %v1311 = vor.u32 1.1754944e-38, %v1310
        %v1312 = vsel %vm1309, %v1311, %v1307
        %v1313 = vmul.f32 1.0, %v1312
        %v1314 = vmul.f32 %v1260, %v1298
        %v1315 = vmul.f32 %v1273, %v1313
        %v1316 = vxor.u32 %v1314, 2147483648
        %v1317 = vxor.u32 %v1315, 2147483648
        %v1318 = vmul.f32 %v1316, 1.442695
        %v1319 = vpow.pop %v1318
        %v1320 = vmul.f32 %v1317, 1.442695
        %v1321 = vpow.pop %v1320
        %v1322 = vadd.f32 %v1319, 1.0
        %v1323 = vadd.f32 %v1321, 1.0
        %v1324 = vrcp.pop %v1322
        %v1325 = vmul.f32 %v1322, %v1324
        %v1326 = vsub.f32 1.0, %v1325
        %v1327 = vmul.f32 %v1324, %v1326
        %v1328 = vadd.f32 %v1324, %v1327
        %vm1329 = vweird.f32 %v1322
        %vm1330 = vweird.f32 %v1324
        %vm1331 = vmor %vm1329, %vm1330
        %v1332 = vsel %vm1331, %v1324, %v1328
        %v1333 = vand.u32 2147483647, %v1322
        %vm1334 = vcmp.eq.f32.partialorder %v1333, 8.507059e+37
        %v1335 = vand.u32 %v1322, 2147483648
        %v1336 = vor.u32 1.1754944e-38, %v1335
        %v1337 = vsel %vm1334, %v1336, %v1332
        %v1338 = vmul.f32 1.0, %v1337
        %v1339 = vrcp.pop %v1323
        %v1340 = vmul.f32 %v1323, %v1339
        %v1341 = vsub.f32 1.0, %v1340
        %v1342 = vmul.f32 %v1339, %v1341
        %v1343 = vadd.f32 %v1339, %v1342
        %vm1344 = vweird.f32 %v1323
        %vm1345 = vweird.f32 %v1339
        %vm1346 = vmor %vm1344, %vm1345
        %v1347 = vsel %vm1346, %v1339, %v1343
        %v1348 = vand.u32 2147483647, %v1323
        %vm1349 = vcmp.eq.f32.partialorder %v1348, 8.507059e+37
        %v1350 = vand.u32 %v1323, 2147483648
        %v1351 = vor.u32 1.1754944e-38, %v1350
        %v1352 = vsel %vm1349, %v1351, %v1347
        %v1353 = vmul.f32 1.0, %v1352
        %v1354 = vmul.f32 %v1132, 7.5
        %v1355 = vmul.f32 %v1133, 7.5
        %v1358 = vrot.slane %v1354, 6
        %v1359 = vrot.slane %v1355, 6
        %v1362 = vadd.f32 %v362, %v1358
        %v1363 = vadd.f32 %v363, %v1359
        %v1364 = vmax.f32 %v1362, 0.0
        %v1365 = vmax.f32 %v1363, 0.0
        %v1366 = vmin.f32 %v1364, 15.0
        %v1367 = vmin.f32 %v1365, 15.0
        %1370 = vst [vmem:[#allocation1] sm:$0xff] %v1366
        %1371 = vst [vmem:[#allocation1 + $0x9] sm:$0xff] %v1367
        %s1372 = scalar_lea.vmem [#allocation1], 2
        %v1373 = vld [vmem:[%s1372] ss:$9 sm:$0xff]
        %v1375 = vlaneseq
        %vm1376 = vcmp.ge.s32.totalorder %v1375, 0
        %vm1377 = vcmp.lt.s32.totalorder %v1375, 256
        %vm1378 = vmand %vm1376, %vm1377
        %1379 = vst.msk [vmem:[#allocation3] ss:$8 sm:$0x3] %vm1378, %v1373
        %1380 = vst.msk [vmem:[#allocation3] ss:$8 sm:$0x0] %vm1378, %v1373
        %v1381 = vadd.f32 %v362, %v1354
        %v1382 = vadd.f32 %v363, %v1355
        %v1383 = vmax.f32 %v1381, 0.0
        %v1384 = vmax.f32 %v1382, 0.0
        %v1385 = vmin.f32 %v1383, 15.0
        %v1386 = vmin.f32 %v1384, 15.0
        %1389 = vst [vmem:[#allocation1] sm:$0xff] %v1385
        %1390 = vst [vmem:[#allocation1 + $0x9] sm:$0xff] %v1386
        %s1391 = scalar_lea.vmem [#allocation1], 1
        %v1392 = vld [vmem:[%s1391] ss:$9 sm:$0xff]
        %s1394 = scalar_lea.vmem [#allocation3], 1
        %1395 = vst.msk [vmem:[%s1394] ss:$8 sm:$0x3] %vm1378, %v1392
        %1396 = vst.msk [vmem:[%s1394] ss:$8 sm:$0x0] %vm1378, %v1392
        %v1399 = vrot.slane %v1353, 7
        %v1400 = vsel %vm1243, %v1338, %v1399
        %s1402 = scalar_lea.vmem [#allocation3], 2
        %1403 = vst.msk [vmem:[%s1402] ss:$8 sm:$0x3] %vm1378, %v1400
        %1404 = vst.msk [vmem:[%s1402] ss:$8 sm:$0x0] %vm1378, %v1400
        %v1405 = vlaneseq
        %v1406 = vshrl.u32 %v1405, 7
        %v1407 = vadd.s32 %v1406, 8
        %v1408 = vcvt.s32.f32 %v1406
        %v1409 = vcvt.s32.f32 %v1407
        %v1410 = vld [vmem:[#allocation3] ss:$8 sm:$0x3]
        %s1411 = scalar_lea.vmem [#allocation3], 1
        %v1412 = vld [vmem:[%s1411] ss:$8 sm:$0x3]
        %s1413 = scalar_lea.vmem [#allocation3], 2
        %v1414 = vld [vmem:[%s1413] ss:$8 sm:$0x3]
        %v1415 = vfloor.f32 %v1410
        %v1416 = vfloor.f32 %v1412
        %v1417 = vsub.f32 %v1410, %v1415
        %v1418 = vsub.f32 %v1412, %v1416
        %v1419 = vadd.f32 %v1415, 1.0
        %v1420 = vmin.f32 %v1419, 15.0
        %v1421 = vadd.f32 %v1416, 1.0
        %v1422 = vmin.f32 %v1421, 15.0
        %v1424 = vperm.slane %v1416, 0
        %v1425 = vperm.slane %v1416, 1
        %vm1428 = vcmp.eq.f32.partialorder %v1408, %v1424
        %vm1429 = vcmp.eq.f32.partialorder %v1408, %v1425
        %vm1430 = vcmp.eq.f32.partialorder %v1409, %v1424
        %vm1431 = vcmp.eq.f32.partialorder %v1409, %v1425
        %v1432 = vsub.f32 1.0, %v1418
        %v1434 = vperm.slane %v1432, 0
        %v1435 = vperm.slane %v1432, 1
        %v1438 = vsel %vm1428, %v1434, 0.0
        %v1439 = vsel %vm1429, %v1435, 0.0
        %v1440 = vsel %vm1430, %v1434, 0.0
        %v1441 = vsel %vm1431, %v1435, 0.0
        %v1443 = vperm.slane %v1422, 0
        %v1444 = vperm.slane %v1422, 1
        %vm1447 = vcmp.eq.f32.partialorder %v1408, %v1443
        %vm1448 = vcmp.eq.f32.partialorder %v1408, %v1444
        %vm1449 = vcmp.eq.f32.partialorder %v1409, %v1443
        %vm1450 = vcmp.eq.f32.partialorder %v1409, %v1444
        %v1452 = vperm.slane %v1418, 0
        %v1453 = vperm.slane %v1418, 1
        %v1456 = vsel %vm1447, %v1452, 0.0
        %v1457 = vsel %vm1448, %v1453, 0.0
        %v1458 = vsel %vm1449, %v1452, 0.0
        %v1459 = vsel %vm1450, %v1453, 0.0
        %v1460 = vadd.f32 %v1438, %v1456
        %v1461 = vadd.f32 %v1439, %v1457
        %v1462 = vadd.f32 %v1440, %v1458
        %v1463 = vadd.f32 %v1441, %v1459
        %v1465 = vperm.slane %v1415, 0
        %v1466 = vperm.slane %v1415, 1
        %vm1469 = vcmp.eq.f32.partialorder %v1408, %v1465
        %vm1470 = vcmp.eq.f32.partialorder %v1408, %v1466
        %vm1471 = vcmp.eq.f32.partialorder %v1409, %v1465
        %vm1472 = vcmp.eq.f32.partialorder %v1409, %v1466
        %v1473 = vsub.f32 1.0, %v1417
        %v1475 = vperm.slane %v1473, 0
        %v1476 = vperm.slane %v1473, 1
        %v1479 = vsel %vm1469, %v1475, 0.0
        %v1480 = vsel %vm1470, %v1476, 0.0
        %v1481 = vsel %vm1471, %v1475, 0.0
        %v1482 = vsel %vm1472, %v1476, 0.0
        %v1484 = vperm.slane %v1420, 0
        %v1485 = vperm.slane %v1420, 1
        %vm1488 = vcmp.eq.f32.partialorder %v1408, %v1484
        %vm1489 = vcmp.eq.f32.partialorder %v1408, %v1485
        %vm1490 = vcmp.eq.f32.partialorder %v1409, %v1484
        %vm1491 = vcmp.eq.f32.partialorder %v1409, %v1485
        %v1493 = vperm.slane %v1417, 0
        %v1494 = vperm.slane %v1417, 1
        %v1497 = vsel %vm1488, %v1493, 0.0
        %v1498 = vsel %vm1489, %v1494, 0.0
        %v1499 = vsel %vm1490, %v1493, 0.0
        %v1500 = vsel %vm1491, %v1494, 0.0
        %v1501 = vadd.f32 %v1479, %v1497
        %v1502 = vadd.f32 %v1480, %v1498
        %v1503 = vadd.f32 %v1481, %v1499
        %v1504 = vadd.f32 %v1482, %v1500
        %v1509 = vrot.slane %v1461, 7
        %v1510 = vrot.slane %v1463, 7
        %v1511 = vsel %vm1243, %v1460, %v1509
        %vm1512 = vcmask 1041409
        %v1513 = vsel %vm1512, %v1460, %v1509
        %v1514 = vrot.slane %v1513, 1
        %vm1515 = vcmask 1042434
        %v1516 = vsel %vm1515, %v1460, %v1509
        %v1517 = vrot.slane %v1516, 2
        %vm1518 = vcmask 1043459
        %v1519 = vsel %vm1518, %v1460, %v1509
        %v1520 = vrot.slane %v1519, 3
        %vm1521 = vcmask 1044484
        %v1522 = vsel %vm1521, %v1460, %v1509
        %v1523 = vrot.slane %v1522, 4
        %vm1524 = vcmask 1045509
        %v1525 = vsel %vm1524, %v1460, %v1509
        %v1526 = vrot.slane %v1525, 5
        %vm1527 = vcmask 1046534
        %v1528 = vsel %vm1527, %v1460, %v1509
        %v1529 = vrot.slane %v1528, 6
        %vm1530 = vcmask 1046528
        %v1531 = vsel %vm1530, %v1509, %v1460
        %v1532 = vrot.slane %v1531, 7
        %v1533 = vsel %vm1243, %v1462, %v1510
        %v1534 = vsel %vm1512, %v1462, %v1510
        %v1535 = vrot.slane %v1534, 1
        %v1536 = vsel %vm1515, %v1462, %v1510
        %v1537 = vrot.slane %v1536, 2
        %v1538 = vsel %vm1518, %v1462, %v1510
        %v1539 = vrot.slane %v1538, 3
        %v1540 = vsel %vm1521, %v1462, %v1510
        %v1541 = vrot.slane %v1540, 4
        %v1542 = vsel %vm1524, %v1462, %v1510
        %v1543 = vrot.slane %v1542, 5
        %v1544 = vsel %vm1527, %v1462, %v1510
        %v1545 = vrot.slane %v1544, 6
        %v1546 = vsel %vm1530, %v1510, %v1462
        %v1547 = vrot.slane %v1546, 7
        %v1548 = vperm.slane %v1511, 0
        %v1549 = vperm.slane %v1511, 1
        %v1550 = vperm.slane %v1514, 0
        %v1551 = vperm.slane %v1514, 1
        %v1552 = vperm.slane %v1517, 0
        %v1553 = vperm.slane %v1517, 1
        %v1554 = vperm.slane %v1520, 0
        %v1555 = vperm.slane %v1520, 1
        %v1556 = vperm.slane %v1523, 0
        %v1557 = vperm.slane %v1523, 1
        %v1558 = vperm.slane %v1526, 0
        %v1559 = vperm.slane %v1526, 1
        %v1560 = vperm.slane %v1529, 0
        %v1561 = vperm.slane %v1529, 1
        %v1562 = vperm.slane %v1532, 0
        %v1563 = vperm.slane %v1532, 1
        %v1564 = vperm.slane %v1533, 0
        %v1565 = vperm.slane %v1533, 1
        %v1566 = vperm.slane %v1535, 0
        %v1567 = vperm.slane %v1535, 1
        %v1568 = vperm.slane %v1537, 0
        %v1569 = vperm.slane %v1537, 1
        %v1570 = vperm.slane %v1539, 0
        %v1571 = vperm.slane %v1539, 1
        %v1572 = vperm.slane %v1541, 0
        %v1573 = vperm.slane %v1541, 1
        %v1574 = vperm.slane %v1543, 0
        %v1575 = vperm.slane %v1543, 1
        %v1576 = vperm.slane %v1545, 0
        %v1577 = vperm.slane %v1545, 1
        %v1578 = vperm.slane %v1547, 0
        %v1579 = vperm.slane %v1547, 1
        %v1612 = vmul.f32 %v1548, %v1501
        %v1613 = vmul.f32 %v1549, %v1502
        %v1614 = vmul.f32 %v1548, %v1503
        %v1615 = vmul.f32 %v1549, %v1504
        %v1616 = vmul.f32 %v1550, %v1501
        %v1617 = vmul.f32 %v1551, %v1502
        %v1618 = vmul.f32 %v1550, %v1503
        %v1619 = vmul.f32 %v1551, %v1504
        %v1620 = vmul.f32 %v1552, %v1501
        %v1621 = vmul.f32 %v1553, %v1502
        %v1622 = vmul.f32 %v1552, %v1503
        %v1623 = vmul.f32 %v1553, %v1504
        %v1624 = vmul.f32 %v1554, %v1501
        %v1625 = vmul.f32 %v1555, %v1502
        %v1626 = vmul.f32 %v1554, %v1503
        %v1627 = vmul.f32 %v1555, %v1504
        %v1628 = vmul.f32 %v1556, %v1501
        %v1629 = vmul.f32 %v1557, %v1502
        %v1630 = vmul.f32 %v1556, %v1503
        %v1631 = vmul.f32 %v1557, %v1504
        %v1632 = vmul.f32 %v1558, %v1501
        %v1633 = vmul.f32 %v1559, %v1502
        %v1634 = vmul.f32 %v1558, %v1503
        %v1635 = vmul.f32 %v1559, %v1504
        %v1636 = vmul.f32 %v1560, %v1501
        %v1637 = vmul.f32 %v1561, %v1502
        %v1638 = vmul.f32 %v1560, %v1503
        %v1639 = vmul.f32 %v1561, %v1504
        %v1640 = vmul.f32 %v1562, %v1501
        %v1641 = vmul.f32 %v1563, %v1502
        %v1642 = vmul.f32 %v1562, %v1503
        %v1643 = vmul.f32 %v1563, %v1504
        %v1644 = vmul.f32 %v1564, %v1501
        %v1645 = vmul.f32 %v1565, %v1502
        %v1646 = vmul.f32 %v1564, %v1503
        %v1647 = vmul.f32 %v1565, %v1504
        %v1648 = vmul.f32 %v1566, %v1501
        %v1649 = vmul.f32 %v1567, %v1502
        %v1650 = vmul.f32 %v1566, %v1503
        %v1651 = vmul.f32 %v1567, %v1504
        %v1652 = vmul.f32 %v1568, %v1501
        %v1653 = vmul.f32 %v1569, %v1502
        %v1654 = vmul.f32 %v1568, %v1503
        %v1655 = vmul.f32 %v1569, %v1504
        %v1656 = vmul.f32 %v1570, %v1501
        %v1657 = vmul.f32 %v1571, %v1502
        %v1658 = vmul.f32 %v1570, %v1503
        %v1659 = vmul.f32 %v1571, %v1504
        %v1660 = vmul.f32 %v1572, %v1501
        %v1661 = vmul.f32 %v1573, %v1502
        %v1662 = vmul.f32 %v1572, %v1503
        %v1663 = vmul.f32 %v1573, %v1504
        %v1664 = vmul.f32 %v1574, %v1501
        %v1665 = vmul.f32 %v1575, %v1502
        %v1666 = vmul.f32 %v1574, %v1503
        %v1667 = vmul.f32 %v1575, %v1504
        %v1668 = vmul.f32 %v1576, %v1501
        %v1669 = vmul.f32 %v1577, %v1502
        %v1670 = vmul.f32 %v1576, %v1503
        %v1671 = vmul.f32 %v1577, %v1504
        %v1672 = vmul.f32 %v1578, %v1501
        %v1673 = vmul.f32 %v1579, %v1502
        %v1674 = vmul.f32 %v1578, %v1503
        %v1675 = vmul.f32 %v1579, %v1504
        %v1676 = vpack.c.bf16 %v1614, %v1612
        %v1677 = vpack.c.bf16 %v1615, %v1613
        %v1678 = vpack.c.bf16 %v1618, %v1616
        %v1679 = vpack.c.bf16 %v1619, %v1617
        %v1680 = vpack.c.bf16 %v1622, %v1620
        %v1681 = vpack.c.bf16 %v1623, %v1621
        %v1682 = vpack.c.bf16 %v1626, %v1624
        %v1683 = vpack.c.bf16 %v1627, %v1625
        %v1684 = vpack.c.bf16 %v1630, %v1628
        %v1685 = vpack.c.bf16 %v1631, %v1629
        %v1686 = vpack.c.bf16 %v1634, %v1632
        %v1687 = vpack.c.bf16 %v1635, %v1633
        %v1688 = vpack.c.bf16 %v1638, %v1636
        %v1689 = vpack.c.bf16 %v1639, %v1637
        %v1690 = vpack.c.bf16 %v1642, %v1640
        %v1691 = vpack.c.bf16 %v1643, %v1641
        %v1692 = vpack.c.bf16 %v1646, %v1644
        %v1693 = vpack.c.bf16 %v1647, %v1645
        %v1694 = vpack.c.bf16 %v1650, %v1648
        %v1695 = vpack.c.bf16 %v1651, %v1649
        %v1696 = vpack.c.bf16 %v1654, %v1652
        %v1697 = vpack.c.bf16 %v1655, %v1653
        %v1698 = vpack.c.bf16 %v1658, %v1656
        %v1699 = vpack.c.bf16 %v1659, %v1657
        %v1700 = vpack.c.bf16 %v1662, %v1660
        %v1701 = vpack.c.bf16 %v1663, %v1661
        %v1702 = vpack.c.bf16 %v1666, %v1664
        %v1703 = vpack.c.bf16 %v1667, %v1665
        %v1704 = vpack.c.bf16 %v1670, %v1668
        %v1705 = vpack.c.bf16 %v1671, %v1669
        %v1706 = vpack.c.bf16 %v1674, %v1672
        %v1707 = vpack.c.bf16 %v1675, %v1673
        %1708 = vst [vmem:[#allocation1] ss:$4 sm:$0xff] %v359
        %v1709 = vld.sshfl [vmem:[#allocation1] sm:$0xff pattern:$0x73625140]
        %v1710 = vld.sshfl [vmem:[#allocation1 + $0x8] sm:$0xff pattern:$0x73625140]
        %1713 = vmatpush.bf16.msra.mxu0 %v1690
        %1714 = vmatpush.bf16.msra.mxu0 %v1688
        %1715 = vmatpush.bf16.msra.mxu0 %v1686
        %1716 = vmatpush.bf16.msra.mxu0 %v1684
        %1717 = vmatpush.bf16.msra.mxu0 %v1682
        %1718 = vmatpush.bf16.msra.mxu0 %v1680
        %1719 = vmatpush.bf16.msra.mxu0 %v1678
        %1720 = vmatpush.bf16.msra.mxu0 %v1676
        %1721 = vmatmul.bf16.gmra.mxu0 %v1709
        %v1722 = vpop.f32.mrf.mxu0
        %v1723 = vadd.f32 0.0, %v1722
        %v1724 = vpop.f32.mrf.mxu0
        %1725 = vdwg.mxu0
        %1726 = vmatpush.bf16.msra.mxu0 %v1706
        %1727 = vmatpush.bf16.msra.mxu0 %v1704
        %1728 = vmatpush.bf16.msra.mxu0 %v1702
        %1729 = vmatpush.bf16.msra.mxu0 %v1700
        %1730 = vmatpush.bf16.msra.mxu0 %v1698
        %1731 = vmatpush.bf16.msra.mxu0 %v1696
        %1732 = vmatpush.bf16.msra.mxu0 %v1694
        %1733 = vmatpush.bf16.msra.mxu0 %v1692
        %1734 = vmatmul.bf16.gmra.mxu0 %v1710
        %v1735 = vpop.f32.mrf.mxu0
        %v1736 = vadd.f32 %v1723, %v1735
        %v1737 = vpop.f32.mrf.mxu0
        %1738 = vdwg.mxu0
        %1739 = vmatpush.bf16.msra.mxu0 %v1691
        %1740 = vmatpush.bf16.msra.mxu0 %v1689
        %1741 = vmatpush.bf16.msra.mxu0 %v1687
        %1742 = vmatpush.bf16.msra.mxu0 %v1685
        %1743 = vmatpush.bf16.msra.mxu0 %v1683
        %1744 = vmatpush.bf16.msra.mxu0 %v1681
        %1745 = vmatpush.bf16.msra.mxu0 %v1679
        %1746 = vmatpush.bf16.msra.mxu0 %v1677
        %1747 = vmatmul.bf16.gmra.mxu0 %v1709
        %v1748 = vpop.f32.mrf.mxu0
        %v1749 = vadd.f32 0.0, %v1748
        %v1750 = vpop.f32.mrf.mxu0
        %1751 = vdwg.mxu0
        %1752 = vmatpush.bf16.msra.mxu0 %v1707
        %1753 = vmatpush.bf16.msra.mxu0 %v1705
        %1754 = vmatpush.bf16.msra.mxu0 %v1703
        %1755 = vmatpush.bf16.msra.mxu0 %v1701
        %1756 = vmatpush.bf16.msra.mxu0 %v1699
        %1757 = vmatpush.bf16.msra.mxu0 %v1697
        %1758 = vmatpush.bf16.msra.mxu0 %v1695
        %1759 = vmatpush.bf16.msra.mxu0 %v1693
        %1760 = vmatmul.bf16.gmra.mxu0 %v1710
        %v1761 = vpop.f32.mrf.mxu0
        %v1762 = vadd.f32 %v1749, %v1761
        %v1763 = vpop.f32.mrf.mxu0
        %1764 = vdwg.mxu0
        %v1766 = vperm.slane %v1414, 0
        %v1767 = vperm.slane %v1414, 1
        %v1770 = vmul.f32 %v1736, %v1766
        %v1771 = vmul.f32 %v1762, %v1767
        %v1774 = vrot.slane %v1771, 4
        %v1775 = vsel %vm454, %v1770, %v1774
        %1777 = vst [vmem:[%s356] sm:$0xff] %v1775
        %s1778 = sand.u32 %s186, 1
        %s1779 = scalar_lea.sflag [#allocation6], %s1778
        %s1780 = sand.u32 %s186, 1
        %s1781 = smul.addr %s1780, 8
        %s1782 = scalar_lea.vmem [#allocation13], %s1781
        // Predicated region
        $region69: #{tpu_custom_call.1} parent=47 // pred_check
          %p1783 = pneg %p196
        $region70: #{tpu_custom_call.1} parent=47 // pred_check_branch
          %1785 = sbr.rel (%p1783) target = $region72
        $region71: #{tpu_custom_call.1} parent=47 // pred_region
          %1787 = vsyncadd %s1779, 0
          %s1788 = smul.addr %s26, 2
          %s1789 = smul.addr %s1788, 4
          %s1790 = scalar_lea.hbm %s7, %s1789
          %s1792 = sshll.u32 %s1782, 4
          %s1793 = int_to_ptr.vmem [resolvable:$true] %s1792
          %s1794 = sshll.u32 %s1790, 4
          %s1795 = int_to_ptr.hbm [resolvable:$true] %s1794
          %1797 = dma.vmem_to_hbm [thread:$0]  %s1793, 128, %s1795, %s1779
        $region72: #{tpu_custom_call.1} parent=47 // pred_fallthru
          _
      $region48: #{tpu_custom_call.1} parent=5 // pred_fallthru
        _
      %p1798 = scmp.le.s32.totalorder 2, %s21
      // Predicated region
      $region73: #{tpu_custom_call.1} parent=5 // pred_check
        %p1799 = pneg %p1798
      $region74: #{tpu_custom_call.1} parent=5 // pred_check_branch
        %1801 = sbr.rel (%p1799) target = $region76
      $region75: #{tpu_custom_call.1} parent=5 // pred_region
        %s1802 = ssub.s32 %s21, 2
        // Predicated region
        $region77: #{tpu_custom_call.1} parent=75 // pred_check
          %p1803 = pneg %p202
        $region78: #{tpu_custom_call.1} parent=75 // pred_check_branch
          %1805 = sbr.rel (%p1803) target = $region80
        $region79: #{tpu_custom_call.1} parent=75 // pred_region
          %s1806 = sand.u32 %s187, 1
          %s1807 = scalar_lea.sflag [#allocation6], %s1806
          %s1808 = sand.u32 %s187, 1
          %s1809 = smul.addr %s1808, 8
          %s1810 = scalar_lea.vmem [#allocation13], %s1809
          %1812 = dma.done %s1807, 128
        $region80: #{tpu_custom_call.1} parent=75 // pred_fallthru
          _
      $region76: #{tpu_custom_call.1} parent=5 // pred_fallthru
        _
    $region6: #{tpu_custom_call.1} parent=1 // loop_footer
      %s25 = sadd.s32 1, %s21
    $region7: #{tpu_custom_call.1} parent=1 // loop_footer_branch
      %20 = sbr.rel target = $region3
    $region8: #{tpu_custom_call.1} parent=1 // loop_exit
      _
    %1813 = vsyncpa [#allocation5], 1
    %s1814 = scalar_lea.sflag [#allocation5], 1
    %1815 = vsyncpa %s1814, 1
    %1816 = vsyncpa [#allocation8], 1
    %1817 = vsyncpa [#allocation11], 1
    %1818 = vsyncpa [#allocation6], 1
    %s1819 = scalar_lea.sflag [#allocation6], 1
    %1820 = vsyncpa %s1819, 1

</llo_original>
